<compile_context>
chip_gen: v6e
topology: v6e:2x2x1
jax: 0.10.0
libtpu: 0.0.40
codegen_flags: <defaults>
</compile_context>

<pallas_src>
import functools

import numpy as np

import jax
import jax.numpy as jnp
from jax.experimental import pallas as pl
from jax.experimental.pallas import tpu as pltpu

BN_EPS = 1e-5


# ----------------------------- host-side helpers ----------------------------

def _ceil_to(x, m):
    return ((x + m - 1) // m) * m


def _col_masks(h, w):
    """(2, h*w) f32 masks: [0] = left neighbor valid (col > 0),
    [1] = right neighbor valid (col < w-1).  Row (dh) spills are handled by
    the zero halo in the staging buffer (requires lpad >= w + 1)."""
    col = np.tile(np.arange(w), h)
    m = np.zeros((2, h * w), np.float32)
    m[0] = (col > 0).astype(np.float32)
    m[1] = (col < w - 1).astype(np.float32)
    return m


def _subsample_matrix(h, w, stride):
    """(h*w, ho*wo) 0/1 matrix selecting the ::stride x ::stride positions."""
    ho = (h - 1) // stride + 1
    wo = (w - 1) // stride + 1
    s = np.zeros((h * w, ho * wo), np.float32)
    for i in range(ho):
        for j in range(wo):
            s[(i * stride) * w + (j * stride), i * wo + j] = 1.0
    return s


def _bn_affine(gamma, beta, mean, var):
    scale = gamma / jnp.sqrt(var + BN_EPS)
    shift = beta - mean * scale
    return scale, shift


def _pick_batch_block(n, max_blk=8):
    """Largest divisor of n (<= max_blk) that still leaves a grid of >= 2
    steps when n >= 2, so both TensorCores get work on v7x."""
    best = 1
    for b in range(1, min(n, max_blk) + 1):
        if n % b != 0:
            continue
        if n >= 2 and n // b < 2:
            continue
        best = b
    return best


# ----------------------------- Pallas kernel --------------------------------

def _conv3x3_flat(pad_ref, col_ref, wmat, m_left, m_right, lpad, w_row):
    """3x3 same-conv on a flat, zero-bordered image as ONE fat-K MXU matmul.

    pad_ref: (C, lpad + HW + lpad) VMEM staging buffer; image at lane offset
             lpad, zero halos on both sides (lpad >= w_row + 1).
    col_ref: (9*C, HW) persistent VMEM im2col scratch (filled by slice-stores,
             no concatenate temporary).
    wmat:    (c_out, 9*C) weights with the BN scale already folded in.
    Returns  (c_out, HW) float32.
    """
    c = pad_ref.shape[0]
    n_pix = col_ref.shape[1]
    t = 0
    for dh in (-1, 0, 1):
        for dw in (-1, 0, 1):
            d = dh * w_row + dw
            win = pad_ref[:, lpad + d:lpad + d + n_pix]   # contiguous lanes
            if dw == -1:
                win = win * m_left                        # left-column wrap
            elif dw == 1:
                win = win * m_right                       # right-column wrap
            col_ref[t * c:(t + 1) * c, :] = win           # aligned when C%8==0
            t += 1
    # Cast at the MXU boundary only (f32 by default; bf16 on v6e/v7x).
    return jnp.dot(wmat, col_ref[...].astype(wmat.dtype),
                   preferred_element_type=jnp.float32)


def _basic_block_kernel(x_ref, w1_ref, b1_ref, w2_ref, b2_ref, m1_ref, m2_ref,
                        *rest, w_in, w_out, lpad1, lpad2, downsample, pad_lo,
                        b_blk):
    if downsample:
        s_ref = rest[0]
        rest = rest[1:]
    else:
        s_ref = None
    o_ref, pad1_ref, pad2_ref, col1_ref, col2_ref = rest

    c_in = x_ref.shape[1]
    c_out = w1_ref.shape[0]
    hw_in = m1_ref.shape[1]
    hw_out = m2_ref.shape[1]

    # Zero only the halo slabs, once per grid step (the interior is fully
    # overwritten for every image, the halos are never written).  Done every
    # step so it is correct even when the "parallel" axis is core-split.
    pad1_ref[:, :lpad1] = jnp.zeros((c_in, lpad1), jnp.float32)
    pad1_ref[:, lpad1 + hw_in:] = jnp.zeros((c_in, lpad1), jnp.float32)
    pad2_ref[:, :lpad2] = jnp.zeros((c_out, lpad2), jnp.float32)
    pad2_ref[:, lpad2 + hw_out:] = jnp.zeros((c_out, lpad2), jnp.float32)

    # Hoist weight / shift / mask loads out of the per-image loop.
    w1 = w1_ref[...]
    w2 = w2_ref[...]
    b1 = b1_ref[...]
    b2 = b2_ref[...]
    ml1, mr1 = m1_ref[0:1, :], m1_ref[1:2, :]
    ml2, mr2 = m2_ref[0:1, :], m2_ref[1:2, :]
    s_mat = s_ref[...] if downsample else None

    # Static unroll over the (small, static) batch block.
    for b in range(b_blk):
        x_img = x_ref[b].astype(jnp.float32)               # (c_in, hw_in)
        pad1_ref[:, lpad1:lpad1 + hw_in] = x_img

        # conv1 (bn1 scale folded) + bn1 shift + ReLU
        y1 = _conv3x3_flat(pad1_ref, col1_ref, w1, ml1, mr1, lpad1, w_in)
        y1 = jnp.maximum(y1 + b1, 0.0)                     # (c_out, hw_in)

        if downsample:
            # Elementwise ops commute with position selection, so subsampling
            # after ReLU/affine is exact; both subsamples are one small matmul.
            y1 = jnp.dot(y1, s_mat, preferred_element_type=jnp.float32)
            sc = jnp.dot(x_img, s_mat, preferred_element_type=jnp.float32)
        else:
            sc = x_img                                     # identity shortcut

        # Intermediate activation never leaves VMEM.
        pad2_ref[:, lpad2:lpad2 + hw_out] = y1

        # conv2 (bn2 scale folded) + bn2 shift
        y2 = _conv3x3_flat(pad2_ref, col2_ref, w2, ml2, mr2, lpad2, w_out)
        y2 = y2 + b2

        # Residual add: channel-padded shortcut as a sublane slice (no
        # placement matmul), then final ReLU.
        if downsample:
            y2 = jnp.concatenate(
                [y2[:pad_lo],
                 y2[pad_lo:pad_lo + c_in] + sc,
                 y2[pad_lo + c_in:]], axis=0)
        else:
            y2 = y2 + sc
        o_ref[b] = jnp.maximum(y2, 0.0).astype(o_ref.dtype)


# ----------------------------- BasicBlock forward ----------------------------

def basic_block_forward(x_nchw, params, *, stride=1,
                        matmul_dtype=jnp.float32):
    """Fused Pallas forward of BasicBlock. x_nchw: (N, Cin, H, W) -> NCHW out.

    matmul_dtype=jnp.bfloat16 feeds the MXU with bf16 operands (v6e/v7x
    native) while keeping f32 accumulation and all elementwise math in f32.

    TODO(synk): LQConv/LQActiv learned-quantization (nbits != None) is not
                defined in the reference snippet; only the nbits=None path
                (plain conv / identity activation) is implemented.
    TODO(synk): BatchNorm uses inference-mode running stats folded into the
                conv weights; training-mode batch statistics are not computed.
    """
    n, c_in, h, w = x_nchw.shape
    c_out = params["w1"].shape[0]
    h_out = (h - 1) // stride + 1
    w_out = (w - 1) // stride + 1
    hw_in, hw_out = h * w, h_out * w_out
    downsample = (stride != 1) or (c_in != c_out)
    pad_lo = c_out // 4

    if downsample:
        if stride != 2:
            raise NotImplementedError(
                "The reference LambdaLayer shortcut (::2 subsample) only "
                "matches stride == 2.")
        if c_in + 2 * pad_lo != c_out:
            raise ValueError(
                "Shortcut channel pad (planes//4 per side) does not produce "
                "c_out channels for this (c_in, c_out) combination.")

    b_blk = _pick_batch_block(n)
    grid = n // b_blk

    # C-major layout with spatial flattened into lanes (free reshape).
    x = x_nchw.reshape(n, c_in, hw_in)

    # Fold BN scale into conv weights; keep only the per-channel shift.
    s1, b1 = _bn_affine(*params["bn1"])
    s2, b2 = _bn_affine(*params["bn2"])
    w1_mat = (jnp.transpose(params["w1"], (0, 2, 3, 1))
              .reshape(c_out, 9 * c_in) * s1[:, None]).astype(matmul_dtype)
    w2_mat = (jnp.transpose(params["w2"], (0, 2, 3, 1))
              .reshape(c_out, 9 * c_out) * s2[:, None]).astype(matmul_dtype)
    b1_col = b1[:, None].astype(jnp.float32)
    b2_col = b2[:, None].astype(jnp.float32)

    m1 = jnp.asarray(_col_masks(h, w))
    m2 = jnp.asarray(_col_masks(h_out, w_out))
    lpad1 = _ceil_to(w + 1, 128)       # aligned interior, room for row halo
    lpad2 = _ceil_to(w_out + 1, 128)
    # Column-only masking is valid only if the zero halo covers row spills.
    assert lpad1 >= w + 1 and lpad2 >= w_out + 1

    inputs = [x, w1_mat, b1_col, w2_mat, b2_col, m1, m2]
    in_specs = [
        pl.BlockSpec((b_blk, c_in, hw_in), lambda i: (i, 0, 0)),
        pl.BlockSpec((c_out, 9 * c_in), lambda i: (0, 0)),
        pl.BlockSpec((c_out, 1), lambda i: (0, 0)),
        pl.BlockSpec((c_out, 9 * c_out), lambda i: (0, 0)),
        pl.BlockSpec((c_out, 1), lambda i: (0, 0)),
        pl.BlockSpec((2, hw_in), lambda i: (0, 0)),
        pl.BlockSpec((2, hw_out), lambda i: (0, 0)),
    ]
    if downsample:
        inputs.append(jnp.asarray(_subsample_matrix(h, w, stride)))
        in_specs.append(pl.BlockSpec((hw_in, hw_out), lambda i: (0, 0)))

    kern = functools.partial(
        _basic_block_kernel, w_in=w, w_out=w_out, lpad1=lpad1, lpad2=lpad2,
        downsample=downsample, pad_lo=pad_lo, b_blk=b_blk)

    # Advisory cost so XLA can overlap this call with neighbors in a graph.
    flops = n * (2 * 9 * c_in * c_out * hw_in + 2 * 9 * c_out * c_out * hw_out)
    if downsample:
        flops += n * 2 * hw_in * hw_out * (c_in + c_out)
    bytes_acc = (x.size + n * c_out * hw_out) * x_nchw.dtype.itemsize \
        + (w1_mat.size + w2_mat.size) * jnp.dtype(matmul_dtype).itemsize \
        + (m1.size + m2.size + 2 * c_out) * 4
    cost = pl.CostEstimate(flops=int(flops), transcendentals=0,
                           bytes_accessed=int(bytes_acc))

    out = pl.pallas_call(
        kern,
        out_shape=jax.ShapeDtypeStruct((n, c_out, hw_out), x_nchw.dtype),
        grid=(grid,),
        in_specs=in_specs,
        out_specs=pl.BlockSpec((b_blk, c_out, hw_out), lambda i: (i, 0, 0)),
        scratch_shapes=[
            pltpu.VMEM((c_in, hw_in + 2 * lpad1), jnp.float32),    # stage 1
            pltpu.VMEM((c_out, hw_out + 2 * lpad2), jnp.float32),  # stage 2
            pltpu.VMEM((9 * c_in, hw_in), jnp.float32),            # im2col 1
            pltpu.VMEM((9 * c_out, hw_out), jnp.float32),          # im2col 2
        ],
        compiler_params=pltpu.CompilerParams(
            dimension_semantics=("parallel",)),
        cost_estimate=cost,
    )(*inputs)

    return out.reshape(n, c_out, h_out, w_out)


# ----------------------------- pure-JAX reference ----------------------------

def basic_block_reference(x, params, *, stride=1):
    """Pure-JAX (XLA) reference in NCHW, matching PyTorch semantics."""
    def conv(z, wgt, s):
        return jax.lax.conv_general_dilated(
            z, wgt, (s, s), ((1, 1), (1, 1)),
            dimension_numbers=("NCHW", "OIHW", "NCHW"))

    def bn(z, p):
        gamma, beta, mean, var = p
        inv = gamma / jnp.sqrt(var + BN_EPS)
        return (z - mean[None, :, None, None]) * inv[None, :, None, None] \
            + beta[None, :, None, None]

    c_in = x.shape[1]
    c_out = params["w1"].shape[0]
    out = jax.nn.relu(bn(conv(x, params["w1"], stride), params["bn1"]))
    out = bn(conv(out, params["w2"], 1), params["bn2"])
    if stride != 1 or c_in != c_out:
        sc = x[:, :, ::2, ::2]
        pad = c_out // 4
        sc = jnp.pad(sc, ((0, 0), (pad, pad), (0, 0), (0, 0)))
    else:
        sc = x
    return jax.nn.relu(out + sc)


def init_params(key, in_planes, planes):
    ks = jax.random.split(key, 8)
    w1 = 0.1 * jax.random.normal(ks[0], (planes, in_planes, 3, 3), jnp.float32)
    w2 = 0.1 * jax.random.normal(ks[1], (planes, planes, 3, 3), jnp.float32)
    bn1 = (jax.random.uniform(ks[2], (planes,), jnp.float32, 0.5, 1.5),   # gamma
           0.1 * jax.random.normal(ks[3], (planes,), jnp.float32),        # beta
           0.1 * jax.random.normal(ks[4], (planes,), jnp.float32),        # mean
           jax.random.uniform(ks[5], (planes,), jnp.float32, 0.5, 1.5))   # var
    bn2 = (jax.random.uniform(ks[6], (planes,), jnp.float32, 0.5, 1.5),
           0.1 * jax.random.normal(ks[7], (planes,), jnp.float32),
           jnp.zeros((planes,), jnp.float32),
           jnp.ones((planes,), jnp.float32))
    return {"w1": w1, "bn1": bn1, "w2": w2, "bn2": bn2}


if __name__ == "__main__":
    key = jax.random.PRNGKey(0)
    k_x, k_p1, k_p2 = jax.random.split(key, 3)

    N, C, H, W = 4, 8, 16, 16          # grid=2 x B_blk=2 (both TCs fed on v7x)
    x = jax.random.normal(k_x, (N, C, H, W), jnp.float32)

    # Case 1: stride=1, identity shortcut (in_planes == planes == 8)
    params1 = init_params(k_p1, C, C)
    out1 = jax.block_until_ready(basic_block_forward(x, params1, stride=1))
    ref1 = jax.block_until_ready(basic_block_reference(x, params1, stride=1))
    assert out1.shape == (N, C, H, W), out1.shape
    assert jnp.allclose(out1, ref1, atol=1e-4, rtol=1e-4), \
        float(jnp.max(jnp.abs(out1 - ref1)))

    # Case 2: stride=2 downsampling block (8 -> 16 channels, padded shortcut)
    params2 = init_params(k_p2, C, 2 * C)
    out2 = jax.block_until_ready(basic_block_forward(x, params2, stride=2))
    ref2 = jax.block_until_ready(basic_block_reference(x, params2, stride=2))
    assert out2.shape == (N, 2 * C, H // 2, W // 2), out2.shape
    assert jnp.allclose(out2, ref2, atol=1e-4, rtol=1e-4), \
        float(jnp.max(jnp.abs(out2 - ref2)))

    # Case 3: bf16 matmul operands (v6e/v7x MXU-native), f32 accumulation;
    # looser tolerance for the bf16 input rounding.
    out3 = jax.block_until_ready(
        basic_block_forward(x, params1, stride=1, matmul_dtype=jnp.bfloat16))
    assert jnp.allclose(out3, ref1, atol=1e-1, rtol=1e-1), \
        float(jnp.max(jnp.abs(out3 - ref1)))

    print("KERNEL_OK")
</pallas_src>

<mosaic_0001>
module attributes {stable_mosaic.version = 11 : i64} {
  func.func @_basic_block_kernel(%arg0: i32, %arg1: memref<2x8x256xf32, #tpu.memory_space<vmem>>, %arg2: memref<8x72xf32, #tpu.memory_space<vmem>>, %arg3: memref<8x1xf32, #tpu.memory_space<vmem>>, %arg4: memref<8x72xf32, #tpu.memory_space<vmem>>, %arg5: memref<8x1xf32, #tpu.memory_space<vmem>>, %arg6: memref<2x256xf32, #tpu.memory_space<vmem>>, %arg7: memref<2x256xf32, #tpu.memory_space<vmem>>, %arg8: memref<2x8x256xf32, #tpu.memory_space<vmem>>, %arg9: memref<8x512xf32, #tpu.memory_space<vmem>>, %arg10: memref<8x512xf32, #tpu.memory_space<vmem>>, %arg11: memref<72x256xf32, #tpu.memory_space<vmem>>, %arg12: memref<72x256xf32, #tpu.memory_space<vmem>>) attributes {dimension_semantics = [#tpu.dimension_semantics<parallel>], iteration_bounds = array<i64: 2>, scalar_prefetch = 0 : i64, scratch_operands = 4 : i64, tpu.core_type = #tpu.core_type<tc>, window_params = [{transform_indices = @transform_0, window_bounds = array<i64: 2, 8, 256>}, {pipeline_mode = #tpu.pipeline_mode<synchronous>, transform_indices = @transform_1, window_bounds = array<i64: 8, 72>}, {pipeline_mode = #tpu.pipeline_mode<synchronous>, transform_indices = @transform_2, window_bounds = array<i64: 8, 1>}, {pipeline_mode = #tpu.pipeline_mode<synchronous>, transform_indices = @transform_3, window_bounds = array<i64: 8, 72>}, {pipeline_mode = #tpu.pipeline_mode<synchronous>, transform_indices = @transform_4, window_bounds = array<i64: 8, 1>}, {pipeline_mode = #tpu.pipeline_mode<synchronous>, transform_indices = @transform_5, window_bounds = array<i64: 2, 256>}, {pipeline_mode = #tpu.pipeline_mode<synchronous>, transform_indices = @transform_6, window_bounds = array<i64: 2, 256>}, {transform_indices = @transform_7, window_bounds = array<i64: 2, 8, 256>}]} {
    %cst = arith.constant 0.000000e+00 : f32
    %0 = vector.broadcast %cst : f32 to vector<8x128xf32>
    %c0 = arith.constant 0 : index
    %c0_0 = arith.constant 0 : index
    %1 = vector.load %arg9[%c0, %c0_0] : memref<8x512xf32, #tpu.memory_space<vmem>>, vector<8x128xf32>
    tpu.vector_store %arg9[%c0, %c0_0], %0 {strides = array<i32>} : memref<8x512xf32, #tpu.memory_space<vmem>>, vector<8x128xf32>,
    %cst_1 = arith.constant 0.000000e+00 : f32
    %2 = vector.broadcast %cst_1 : f32 to vector<8x128xf32>
    %c0_2 = arith.constant 0 : index
    %c384 = arith.constant 384 : index
    %3 = vector.load %arg9[%c0_2, %c384] : memref<8x512xf32, #tpu.memory_space<vmem>>, vector<8x128xf32>
    tpu.vector_store %arg9[%c0_2, %c384], %2 {strides = array<i32>} : memref<8x512xf32, #tpu.memory_space<vmem>>, vector<8x128xf32>,
    %cst_3 = arith.constant 0.000000e+00 : f32
    %4 = vector.broadcast %cst_3 : f32 to vector<8x128xf32>
    %c0_4 = arith.constant 0 : index
    %c0_5 = arith.constant 0 : index
    %5 = vector.load %arg10[%c0_4, %c0_5] : memref<8x512xf32, #tpu.memory_space<vmem>>, vector<8x128xf32>
    tpu.vector_store %arg10[%c0_4, %c0_5], %4 {strides = array<i32>} : memref<8x512xf32, #tpu.memory_space<vmem>>, vector<8x128xf32>,
    %cst_6 = arith.constant 0.000000e+00 : f32
    %6 = vector.broadcast %cst_6 : f32 to vector<8x128xf32>
    %c0_7 = arith.constant 0 : index
    %c384_8 = arith.constant 384 : index
    %7 = vector.load %arg10[%c0_7, %c384_8] : memref<8x512xf32, #tpu.memory_space<vmem>>, vector<8x128xf32>
    tpu.vector_store %arg10[%c0_7, %c384_8], %6 {strides = array<i32>} : memref<8x512xf32, #tpu.memory_space<vmem>>, vector<8x128xf32>,
    %c0_9 = arith.constant 0 : index
    %c0_10 = arith.constant 0 : index
    %8 = vector.load %arg2[%c0_9, %c0_10] : memref<8x72xf32, #tpu.memory_space<vmem>>, vector<8x72xf32>
    %c0_11 = arith.constant 0 : index
    %c0_12 = arith.constant 0 : index
    %9 = vector.load %arg4[%c0_11, %c0_12] : memref<8x72xf32, #tpu.memory_space<vmem>>, vector<8x72xf32>
    %c0_13 = arith.constant 0 : index
    %c0_14 = arith.constant 0 : index
    %10 = vector.load %arg3[%c0_13, %c0_14] : memref<8x1xf32, #tpu.memory_space<vmem>>, vector<8x1xf32>
    %c0_15 = arith.constant 0 : index
    %c0_16 = arith.constant 0 : index
    %11 = vector.load %arg5[%c0_15, %c0_16] : memref<8x1xf32, #tpu.memory_space<vmem>>, vector<8x1xf32>
    %c0_17 = arith.constant 0 : index
    %c0_18 = arith.constant 0 : index
    %12 = vector.load %arg6[%c0_17, %c0_18] : memref<2x256xf32, #tpu.memory_space<vmem>>, vector<1x256xf32>
    %c1 = arith.constant 1 : index
    %c0_19 = arith.constant 0 : index
    %13 = vector.load %arg6[%c1, %c0_19] : memref<2x256xf32, #tpu.memory_space<vmem>>, vector<1x256xf32>
    %c0_20 = arith.constant 0 : index
    %c0_21 = arith.constant 0 : index
    %14 = vector.load %arg7[%c0_20, %c0_21] : memref<2x256xf32, #tpu.memory_space<vmem>>, vector<1x256xf32>
    %c1_22 = arith.constant 1 : index
    %c0_23 = arith.constant 0 : index
    %15 = vector.load %arg7[%c1_22, %c0_23] : memref<2x256xf32, #tpu.memory_space<vmem>>, vector<1x256xf32>
    %c0_24 = arith.constant 0 : index
    %c0_25 = arith.constant 0 : index
    %c0_26 = arith.constant 0 : index
    %16 = vector.load %arg1[%c0_24, %c0_25, %c0_26] : memref<2x8x256xf32, #tpu.memory_space<vmem>>, vector<1x8x256xf32>
    %17 = vector.shape_cast %16 : vector<1x8x256xf32> to vector<8x256xf32>
    %c0_27 = arith.constant 0 : index
    %c128 = arith.constant 128 : index
    %18 = vector.load %arg9[%c0_27, %c128] : memref<8x512xf32, #tpu.memory_space<vmem>>, vector<8x256xf32>
    tpu.vector_store %arg9[%c0_27, %c128], %17 {strides = array<i32>} : memref<8x512xf32, #tpu.memory_space<vmem>>, vector<8x256xf32>,
    %c0_28 = arith.constant 0 : index
    %c111 = arith.constant 111 : index
    %19 = vector.load %arg9[%c0_28, %c111] : memref<8x512xf32, #tpu.memory_space<vmem>>, vector<8x256xf32>
    %20 = vector.broadcast %12 : vector<1x256xf32> to vector<8x256xf32>
    %21 = arith.mulf %19, %20 : vector<8x256xf32>
    %c0_29 = arith.constant 0 : index
    %c0_30 = arith.constant 0 : index
    %22 = vector.load %arg11[%c0_29, %c0_30] : memref<72x256xf32, #tpu.memory_space<vmem>>, vector<8x256xf32>
    tpu.vector_store %arg11[%c0_29, %c0_30], %21 {strides = array<i32>} : memref<72x256xf32, #tpu.memory_space<vmem>>, vector<8x256xf32>,
    %c0_31 = arith.constant 0 : index
    %c112 = arith.constant 112 : index
    %23 = vector.load %arg9[%c0_31, %c112] : memref<8x512xf32, #tpu.memory_space<vmem>>, vector<8x256xf32>
    %c8 = arith.constant 8 : index
    %c0_32 = arith.constant 0 : index
    %24 = vector.load %arg11[%c8, %c0_32] : memref<72x256xf32, #tpu.memory_space<vmem>>, vector<8x256xf32>
    tpu.vector_store %arg11[%c8, %c0_32], %23 {strides = array<i32>} : memref<72x256xf32, #tpu.memory_space<vmem>>, vector<8x256xf32>,
    %c0_33 = arith.constant 0 : index
    %c113 = arith.constant 113 : index
    %25 = vector.load %arg9[%c0_33, %c113] : memref<8x512xf32, #tpu.memory_space<vmem>>, vector<8x256xf32>
    %26 = vector.broadcast %13 : vector<1x256xf32> to vector<8x256xf32>
    %27 = arith.mulf %25, %26 : vector<8x256xf32>
    %c16 = arith.constant 16 : index
    %c0_34 = arith.constant 0 : index
    %28 = vector.load %arg11[%c16, %c0_34] : memref<72x256xf32, #tpu.memory_space<vmem>>, vector<8x256xf32>
    tpu.vector_store %arg11[%c16, %c0_34], %27 {strides = array<i32>} : memref<72x256xf32, #tpu.memory_space<vmem>>, vector<8x256xf32>,
    %c0_35 = arith.constant 0 : index
    %c127 = arith.constant 127 : index
    %29 = vector.load %arg9[%c0_35, %c127] : memref<8x512xf32, #tpu.memory_space<vmem>>, vector<8x256xf32>
    %30 = vector.broadcast %12 : vector<1x256xf32> to vector<8x256xf32>
    %31 = arith.mulf %29, %30 : vector<8x256xf32>
    %c24 = arith.constant 24 : index
    %c0_36 = arith.constant 0 : index
    %32 = vector.load %arg11[%c24, %c0_36] : memref<72x256xf32, #tpu.memory_space<vmem>>, vector<8x256xf32>
    tpu.vector_store %arg11[%c24, %c0_36], %31 {strides = array<i32>} : memref<72x256xf32, #tpu.memory_space<vmem>>, vector<8x256xf32>,
    %c0_37 = arith.constant 0 : index
    %c128_38 = arith.constant 128 : index
    %33 = vector.load %arg9[%c0_37, %c128_38] : memref<8x512xf32, #tpu.memory_space<vmem>>, vector<8x256xf32>
    %c32 = arith.constant 32 : index
    %c0_39 = arith.constant 0 : index
    %34 = vector.load %arg11[%c32, %c0_39] : memref<72x256xf32, #tpu.memory_space<vmem>>, vector<8x256xf32>
    tpu.vector_store %arg11[%c32, %c0_39], %33 {strides = array<i32>} : memref<72x256xf32, #tpu.memory_space<vmem>>, vector<8x256xf32>,
    %c0_40 = arith.constant 0 : index
    %c129 = arith.constant 129 : index
    %35 = vector.load %arg9[%c0_40, %c129] : memref<8x512xf32, #tpu.memory_space<vmem>>, vector<8x256xf32>
    %36 = vector.broadcast %13 : vector<1x256xf32> to vector<8x256xf32>
    %37 = arith.mulf %35, %36 : vector<8x256xf32>
    %c40 = arith.constant 40 : index
    %c0_41 = arith.constant 0 : index
    %38 = vector.load %arg11[%c40, %c0_41] : memref<72x256xf32, #tpu.memory_space<vmem>>, vector<8x256xf32>
    tpu.vector_store %arg11[%c40, %c0_41], %37 {strides = array<i32>} : memref<72x256xf32, #tpu.memory_space<vmem>>, vector<8x256xf32>,
    %c0_42 = arith.constant 0 : index
    %c143 = arith.constant 143 : index
    %39 = vector.load %arg9[%c0_42, %c143] : memref<8x512xf32, #tpu.memory_space<vmem>>, vector<8x256xf32>
    %40 = vector.broadcast %12 : vector<1x256xf32> to vector<8x256xf32>
    %41 = arith.mulf %39, %40 : vector<8x256xf32>
    %c48 = arith.constant 48 : index
    %c0_43 = arith.constant 0 : index
    %42 = vector.load %arg11[%c48, %c0_43] : memref<72x256xf32, #tpu.memory_space<vmem>>, vector<8x256xf32>
    tpu.vector_store %arg11[%c48, %c0_43], %41 {strides = array<i32>} : memref<72x256xf32, #tpu.memory_space<vmem>>, vector<8x256xf32>,
    %c0_44 = arith.constant 0 : index
    %c144 = arith.constant 144 : index
    %43 = vector.load %arg9[%c0_44, %c144] : memref<8x512xf32, #tpu.memory_space<vmem>>, vector<8x256xf32>
    %c56 = arith.constant 56 : index
    %c0_45 = arith.constant 0 : index
    %44 = vector.load %arg11[%c56, %c0_45] : memref<72x256xf32, #tpu.memory_space<vmem>>, vector<8x256xf32>
    tpu.vector_store %arg11[%c56, %c0_45], %43 {strides = array<i32>} : memref<72x256xf32, #tpu.memory_space<vmem>>, vector<8x256xf32>,
    %c0_46 = arith.constant 0 : index
    %c145 = arith.constant 145 : index
    %45 = vector.load %arg9[%c0_46, %c145] : memref<8x512xf32, #tpu.memory_space<vmem>>, vector<8x256xf32>
    %46 = vector.broadcast %13 : vector<1x256xf32> to vector<8x256xf32>
    %47 = arith.mulf %45, %46 : vector<8x256xf32>
    %c64 = arith.constant 64 : index
    %c0_47 = arith.constant 0 : index
    %48 = vector.load %arg11[%c64, %c0_47] : memref<72x256xf32, #tpu.memory_space<vmem>>, vector<8x256xf32>
    tpu.vector_store %arg11[%c64, %c0_47], %47 {strides = array<i32>} : memref<72x256xf32, #tpu.memory_space<vmem>>, vector<8x256xf32>,
    %c0_48 = arith.constant 0 : index
    %c0_49 = arith.constant 0 : index
    %49 = vector.load %arg11[%c0_48, %c0_49] : memref<72x256xf32, #tpu.memory_space<vmem>>, vector<72x256xf32>
    %cst_50 = arith.constant dense<0.000000e+00> : vector<8x256xf32>
    %50 = tpu.matmul %8, %49, %cst_50 {dimension_numbers = #tpu.dot_dimension_numbers<[1], [0], [0], [1], [0, 0, 1, 1], [], []>} : vector<8x72xf32>, vector<72x256xf32>, vector<8x256xf32> -> vector<8x256xf32>
    %51 = vector.broadcast %10 : vector<8x1xf32> to vector<8x256xf32>
    %52 = arith.addf %50, %51 : vector<8x256xf32>
    %cst_51 = arith.constant 0.000000e+00 : f32
    %53 = vector.broadcast %cst_51 : f32 to vector<8x256xf32>
    %54 = arith.maximumf %52, %53 : vector<8x256xf32>
    %c0_52 = arith.constant 0 : index
    %c128_53 = arith.constant 128 : index
    %55 = vector.load %arg10[%c0_52, %c128_53] : memref<8x512xf32, #tpu.memory_space<vmem>>, vector<8x256xf32>
    tpu.vector_store %arg10[%c0_52, %c128_53], %54 {strides = array<i32>} : memref<8x512xf32, #tpu.memory_space<vmem>>, vector<8x256xf32>,
    %c0_54 = arith.constant 0 : index
    %c111_55 = arith.constant 111 : index
    %56 = vector.load %arg10[%c0_54, %c111_55] : memref<8x512xf32, #tpu.memory_space<vmem>>, vector<8x256xf32>
    %57 = vector.broadcast %14 : vector<1x256xf32> to vector<8x256xf32>
    %58 = arith.mulf %56, %57 : vector<8x256xf32>
    %c0_56 = arith.constant 0 : index
    %c0_57 = arith.constant 0 : index
    %59 = vector.load %arg12[%c0_56, %c0_57] : memref<72x256xf32, #tpu.memory_space<vmem>>, vector<8x256xf32>
    tpu.vector_store %arg12[%c0_56, %c0_57], %58 {strides = array<i32>} : memref<72x256xf32, #tpu.memory_space<vmem>>, vector<8x256xf32>,
    %c0_58 = arith.constant 0 : index
    %c112_59 = arith.constant 112 : index
    %60 = vector.load %arg10[%c0_58, %c112_59] : memref<8x512xf32, #tpu.memory_space<vmem>>, vector<8x256xf32>
    %c8_60 = arith.constant 8 : index
    %c0_61 = arith.constant 0 : index
    %61 = vector.load %arg12[%c8_60, %c0_61] : memref<72x256xf32, #tpu.memory_space<vmem>>, vector<8x256xf32>
    tpu.vector_store %arg12[%c8_60, %c0_61], %60 {strides = array<i32>} : memref<72x256xf32, #tpu.memory_space<vmem>>, vector<8x256xf32>,
    %c0_62 = arith.constant 0 : index
    %c113_63 = arith.constant 113 : index
    %62 = vector.load %arg10[%c0_62, %c113_63] : memref<8x512xf32, #tpu.memory_space<vmem>>, vector<8x256xf32>
    %63 = vector.broadcast %15 : vector<1x256xf32> to vector<8x256xf32>
    %64 = arith.mulf %62, %63 : vector<8x256xf32>
    %c16_64 = arith.constant 16 : index
    %c0_65 = arith.constant 0 : index
    %65 = vector.load %arg12[%c16_64, %c0_65] : memref<72x256xf32, #tpu.memory_space<vmem>>, vector<8x256xf32>
    tpu.vector_store %arg12[%c16_64, %c0_65], %64 {strides = array<i32>} : memref<72x256xf32, #tpu.memory_space<vmem>>, vector<8x256xf32>,
    %c0_66 = arith.constant 0 : index
    %c127_67 = arith.constant 127 : index
    %66 = vector.load %arg10[%c0_66, %c127_67] : memref<8x512xf32, #tpu.memory_space<vmem>>, vector<8x256xf32>
    %67 = vector.broadcast %14 : vector<1x256xf32> to vector<8x256xf32>
    %68 = arith.mulf %66, %67 : vector<8x256xf32>
    %c24_68 = arith.constant 24 : index
    %c0_69 = arith.constant 0 : index
    %69 = vector.load %arg12[%c24_68, %c0_69] : memref<72x256xf32, #tpu.memory_space<vmem>>, vector<8x256xf32>
    tpu.vector_store %arg12[%c24_68, %c0_69], %68 {strides = array<i32>} : memref<72x256xf32, #tpu.memory_space<vmem>>, vector<8x256xf32>,
    %c0_70 = arith.constant 0 : index
    %c128_71 = arith.constant 128 : index
    %70 = vector.load %arg10[%c0_70, %c128_71] : memref<8x512xf32, #tpu.memory_space<vmem>>, vector<8x256xf32>
    %c32_72 = arith.constant 32 : index
    %c0_73 = arith.constant 0 : index
    %71 = vector.load %arg12[%c32_72, %c0_73] : memref<72x256xf32, #tpu.memory_space<vmem>>, vector<8x256xf32>
    tpu.vector_store %arg12[%c32_72, %c0_73], %70 {strides = array<i32>} : memref<72x256xf32, #tpu.memory_space<vmem>>, vector<8x256xf32>,
    %c0_74 = arith.constant 0 : index
    %c129_75 = arith.constant 129 : index
    %72 = vector.load %arg10[%c0_74, %c129_75] : memref<8x512xf32, #tpu.memory_space<vmem>>, vector<8x256xf32>
    %73 = vector.broadcast %15 : vector<1x256xf32> to vector<8x256xf32>
    %74 = arith.mulf %72, %73 : vector<8x256xf32>
    %c40_76 = arith.constant 40 : index
    %c0_77 = arith.constant 0 : index
    %75 = vector.load %arg12[%c40_76, %c0_77] : memref<72x256xf32, #tpu.memory_space<vmem>>, vector<8x256xf32>
    tpu.vector_store %arg12[%c40_76, %c0_77], %74 {strides = array<i32>} : memref<72x256xf32, #tpu.memory_space<vmem>>, vector<8x256xf32>,
    %c0_78 = arith.constant 0 : index
    %c143_79 = arith.constant 143 : index
    %76 = vector.load %arg10[%c0_78, %c143_79] : memref<8x512xf32, #tpu.memory_space<vmem>>, vector<8x256xf32>
    %77 = vector.broadcast %14 : vector<1x256xf32> to vector<8x256xf32>
    %78 = arith.mulf %76, %77 : vector<8x256xf32>
    %c48_80 = arith.constant 48 : index
    %c0_81 = arith.constant 0 : index
    %79 = vector.load %arg12[%c48_80, %c0_81] : memref<72x256xf32, #tpu.memory_space<vmem>>, vector<8x256xf32>
    tpu.vector_store %arg12[%c48_80, %c0_81], %78 {strides = array<i32>} : memref<72x256xf32, #tpu.memory_space<vmem>>, vector<8x256xf32>,
    %c0_82 = arith.constant 0 : index
    %c144_83 = arith.constant 144 : index
    %80 = vector.load %arg10[%c0_82, %c144_83] : memref<8x512xf32, #tpu.memory_space<vmem>>, vector<8x256xf32>
    %c56_84 = arith.constant 56 : index
    %c0_85 = arith.constant 0 : index
    %81 = vector.load %arg12[%c56_84, %c0_85] : memref<72x256xf32, #tpu.memory_space<vmem>>, vector<8x256xf32>
    tpu.vector_store %arg12[%c56_84, %c0_85], %80 {strides = array<i32>} : memref<72x256xf32, #tpu.memory_space<vmem>>, vector<8x256xf32>,
    %c0_86 = arith.constant 0 : index
    %c145_87 = arith.constant 145 : index
    %82 = vector.load %arg10[%c0_86, %c145_87] : memref<8x512xf32, #tpu.memory_space<vmem>>, vector<8x256xf32>
    %83 = vector.broadcast %15 : vector<1x256xf32> to vector<8x256xf32>
    %84 = arith.mulf %82, %83 : vector<8x256xf32>
    %c64_88 = arith.constant 64 : index
    %c0_89 = arith.constant 0 : index
    %85 = vector.load %arg12[%c64_88, %c0_89] : memref<72x256xf32, #tpu.memory_space<vmem>>, vector<8x256xf32>
    tpu.vector_store %arg12[%c64_88, %c0_89], %84 {strides = array<i32>} : memref<72x256xf32, #tpu.memory_space<vmem>>, vector<8x256xf32>,
    %c0_90 = arith.constant 0 : index
    %c0_91 = arith.constant 0 : index
    %86 = vector.load %arg12[%c0_90, %c0_91] : memref<72x256xf32, #tpu.memory_space<vmem>>, vector<72x256xf32>
    %cst_92 = arith.constant dense<0.000000e+00> : vector<8x256xf32>
    %87 = tpu.matmul %9, %86, %cst_92 {dimension_numbers = #tpu.dot_dimension_numbers<[1], [0], [0], [1], [0, 0, 1, 1], [], []>} : vector<8x72xf32>, vector<72x256xf32>, vector<8x256xf32> -> vector<8x256xf32>
    %88 = vector.broadcast %11 : vector<8x1xf32> to vector<8x256xf32>
    %89 = arith.addf %87, %88 : vector<8x256xf32>
    %90 = arith.addf %89, %17 : vector<8x256xf32>
    %cst_93 = arith.constant 0.000000e+00 : f32
    %91 = vector.broadcast %cst_93 : f32 to vector<8x256xf32>
    %92 = arith.maximumf %90, %91 : vector<8x256xf32>
    %c0_94 = arith.constant 0 : index
    %c0_95 = arith.constant 0 : index
    %c0_96 = arith.constant 0 : index
    %93 = vector.load %arg8[%c0_94, %c0_95, %c0_96] : memref<2x8x256xf32, #tpu.memory_space<vmem>>, vector<1x8x256xf32>
    %94 = vector.shape_cast %93 : vector<1x8x256xf32> to vector<8x256xf32>
    %95 = vector.shape_cast %92 : vector<8x256xf32> to vector<1x8x256xf32>
    tpu.vector_store %arg8[%c0_94, %c0_95, %c0_96], %95 {strides = array<i32>} : memref<2x8x256xf32, #tpu.memory_space<vmem>>, vector<1x8x256xf32>,
    %c1_97 = arith.constant 1 : index
    %c0_98 = arith.constant 0 : index
    %c0_99 = arith.constant 0 : index
    %96 = vector.load %arg1[%c1_97, %c0_98, %c0_99] : memref<2x8x256xf32, #tpu.memory_space<vmem>>, vector<1x8x256xf32>
    %97 = vector.shape_cast %96 : vector<1x8x256xf32> to vector<8x256xf32>
    %c0_100 = arith.constant 0 : index
    %c128_101 = arith.constant 128 : index
    %98 = vector.load %arg9[%c0_100, %c128_101] : memref<8x512xf32, #tpu.memory_space<vmem>>, vector<8x256xf32>
    tpu.vector_store %arg9[%c0_100, %c128_101], %97 {strides = array<i32>} : memref<8x512xf32, #tpu.memory_space<vmem>>, vector<8x256xf32>,
    %c0_102 = arith.constant 0 : index
    %c111_103 = arith.constant 111 : index
    %99 = vector.load %arg9[%c0_102, %c111_103] : memref<8x512xf32, #tpu.memory_space<vmem>>, vector<8x256xf32>
    %100 = vector.broadcast %12 : vector<1x256xf32> to vector<8x256xf32>
    %101 = arith.mulf %99, %100 : vector<8x256xf32>
    %c0_104 = arith.constant 0 : index
    %c0_105 = arith.constant 0 : index
    %102 = vector.load %arg11[%c0_104, %c0_105] : memref<72x256xf32, #tpu.memory_space<vmem>>, vector<8x256xf32>
    tpu.vector_store %arg11[%c0_104, %c0_105], %101 {strides = array<i32>} : memref<72x256xf32, #tpu.memory_space<vmem>>, vector<8x256xf32>,
    %c0_106 = arith.constant 0 : index
    %c112_107 = arith.constant 112 : index
    %103 = vector.load %arg9[%c0_106, %c112_107] : memref<8x512xf32, #tpu.memory_space<vmem>>, vector<8x256xf32>
    %c8_108 = arith.constant 8 : index
    %c0_109 = arith.constant 0 : index
    %104 = vector.load %arg11[%c8_108, %c0_109] : memref<72x256xf32, #tpu.memory_space<vmem>>, vector<8x256xf32>
    tpu.vector_store %arg11[%c8_108, %c0_109], %103 {strides = array<i32>} : memref<72x256xf32, #tpu.memory_space<vmem>>, vector<8x256xf32>,
    %c0_110 = arith.constant 0 : index
    %c113_111 = arith.constant 113 : index
    %105 = vector.load %arg9[%c0_110, %c113_111] : memref<8x512xf32, #tpu.memory_space<vmem>>, vector<8x256xf32>
    %106 = vector.broadcast %13 : vector<1x256xf32> to vector<8x256xf32>
    %107 = arith.mulf %105, %106 : vector<8x256xf32>
    %c16_112 = arith.constant 16 : index
    %c0_113 = arith.constant 0 : index
    %108 = vector.load %arg11[%c16_112, %c0_113] : memref<72x256xf32, #tpu.memory_space<vmem>>, vector<8x256xf32>
    tpu.vector_store %arg11[%c16_112, %c0_113], %107 {strides = array<i32>} : memref<72x256xf32, #tpu.memory_space<vmem>>, vector<8x256xf32>,
    %c0_114 = arith.constant 0 : index
    %c127_115 = arith.constant 127 : index
    %109 = vector.load %arg9[%c0_114, %c127_115] : memref<8x512xf32, #tpu.memory_space<vmem>>, vector<8x256xf32>
    %110 = vector.broadcast %12 : vector<1x256xf32> to vector<8x256xf32>
    %111 = arith.mulf %109, %110 : vector<8x256xf32>
    %c24_116 = arith.constant 24 : index
    %c0_117 = arith.constant 0 : index
    %112 = vector.load %arg11[%c24_116, %c0_117] : memref<72x256xf32, #tpu.memory_space<vmem>>, vector<8x256xf32>
    tpu.vector_store %arg11[%c24_116, %c0_117], %111 {strides = array<i32>} : memref<72x256xf32, #tpu.memory_space<vmem>>, vector<8x256xf32>,
    %c0_118 = arith.constant 0 : index
    %c128_119 = arith.constant 128 : index
    %113 = vector.load %arg9[%c0_118, %c128_119] : memref<8x512xf32, #tpu.memory_space<vmem>>, vector<8x256xf32>
    %c32_120 = arith.constant 32 : index
    %c0_121 = arith.constant 0 : index
    %114 = vector.load %arg11[%c32_120, %c0_121] : memref<72x256xf32, #tpu.memory_space<vmem>>, vector<8x256xf32>
    tpu.vector_store %arg11[%c32_120, %c0_121], %113 {strides = array<i32>} : memref<72x256xf32, #tpu.memory_space<vmem>>, vector<8x256xf32>,
    %c0_122 = arith.constant 0 : index
    %c129_123 = arith.constant 129 : index
    %115 = vector.load %arg9[%c0_122, %c129_123] : memref<8x512xf32, #tpu.memory_space<vmem>>, vector<8x256xf32>
    %116 = vector.broadcast %13 : vector<1x256xf32> to vector<8x256xf32>
    %117 = arith.mulf %115, %116 : vector<8x256xf32>
    %c40_124 = arith.constant 40 : index
    %c0_125 = arith.constant 0 : index
    %118 = vector.load %arg11[%c40_124, %c0_125] : memref<72x256xf32, #tpu.memory_space<vmem>>, vector<8x256xf32>
    tpu.vector_store %arg11[%c40_124, %c0_125], %117 {strides = array<i32>} : memref<72x256xf32, #tpu.memory_space<vmem>>, vector<8x256xf32>,
    %c0_126 = arith.constant 0 : index
    %c143_127 = arith.constant 143 : index
    %119 = vector.load %arg9[%c0_126, %c143_127] : memref<8x512xf32, #tpu.memory_space<vmem>>, vector<8x256xf32>
    %120 = vector.broadcast %12 : vector<1x256xf32> to vector<8x256xf32>
    %121 = arith.mulf %119, %120 : vector<8x256xf32>
    %c48_128 = arith.constant 48 : index
    %c0_129 = arith.constant 0 : index
    %122 = vector.load %arg11[%c48_128, %c0_129] : memref<72x256xf32, #tpu.memory_space<vmem>>, vector<8x256xf32>
    tpu.vector_store %arg11[%c48_128, %c0_129], %121 {strides = array<i32>} : memref<72x256xf32, #tpu.memory_space<vmem>>, vector<8x256xf32>,
    %c0_130 = arith.constant 0 : index
    %c144_131 = arith.constant 144 : index
    %123 = vector.load %arg9[%c0_130, %c144_131] : memref<8x512xf32, #tpu.memory_space<vmem>>, vector<8x256xf32>
    %c56_132 = arith.constant 56 : index
    %c0_133 = arith.constant 0 : index
    %124 = vector.load %arg11[%c56_132, %c0_133] : memref<72x256xf32, #tpu.memory_space<vmem>>, vector<8x256xf32>
    tpu.vector_store %arg11[%c56_132, %c0_133], %123 {strides = array<i32>} : memref<72x256xf32, #tpu.memory_space<vmem>>, vector<8x256xf32>,
    %c0_134 = arith.constant 0 : index
    %c145_135 = arith.constant 145 : index
    %125 = vector.load %arg9[%c0_134, %c145_135] : memref<8x512xf32, #tpu.memory_space<vmem>>, vector<8x256xf32>
    %126 = vector.broadcast %13 : vector<1x256xf32> to vector<8x256xf32>
    %127 = arith.mulf %125, %126 : vector<8x256xf32>
    %c64_136 = arith.constant 64 : index
    %c0_137 = arith.constant 0 : index
    %128 = vector.load %arg11[%c64_136, %c0_137] : memref<72x256xf32, #tpu.memory_space<vmem>>, vector<8x256xf32>
    tpu.vector_store %arg11[%c64_136, %c0_137], %127 {strides = array<i32>} : memref<72x256xf32, #tpu.memory_space<vmem>>, vector<8x256xf32>,
    %c0_138 = arith.constant 0 : index
    %c0_139 = arith.constant 0 : index
    %129 = vector.load %arg11[%c0_138, %c0_139] : memref<72x256xf32, #tpu.memory_space<vmem>>, vector<72x256xf32>
    %cst_140 = arith.constant dense<0.000000e+00> : vector<8x256xf32>
    %130 = tpu.matmul %8, %129, %cst_140 {dimension_numbers = #tpu.dot_dimension_numbers<[1], [0], [0], [1], [0, 0, 1, 1], [], []>} : vector<8x72xf32>, vector<72x256xf32>, vector<8x256xf32> -> vector<8x256xf32>
    %131 = vector.broadcast %10 : vector<8x1xf32> to vector<8x256xf32>
    %132 = arith.addf %130, %131 : vector<8x256xf32>
    %cst_141 = arith.constant 0.000000e+00 : f32
    %133 = vector.broadcast %cst_141 : f32 to vector<8x256xf32>
    %134 = arith.maximumf %132, %133 : vector<8x256xf32>
    %c0_142 = arith.constant 0 : index
    %c128_143 = arith.constant 128 : index
    %135 = vector.load %arg10[%c0_142, %c128_143] : memref<8x512xf32, #tpu.memory_space<vmem>>, vector<8x256xf32>
    tpu.vector_store %arg10[%c0_142, %c128_143], %134 {strides = array<i32>} : memref<8x512xf32, #tpu.memory_space<vmem>>, vector<8x256xf32>,
    %c0_144 = arith.constant 0 : index
    %c111_145 = arith.constant 111 : index
    %136 = vector.load %arg10[%c0_144, %c111_145] : memref<8x512xf32, #tpu.memory_space<vmem>>, vector<8x256xf32>
    %137 = vector.broadcast %14 : vector<1x256xf32> to vector<8x256xf32>
    %138 = arith.mulf %136, %137 : vector<8x256xf32>
    %c0_146 = arith.constant 0 : index
    %c0_147 = arith.constant 0 : index
    %139 = vector.load %arg12[%c0_146, %c0_147] : memref<72x256xf32, #tpu.memory_space<vmem>>, vector<8x256xf32>
    tpu.vector_store %arg12[%c0_146, %c0_147], %138 {strides = array<i32>} : memref<72x256xf32, #tpu.memory_space<vmem>>, vector<8x256xf32>,
    %c0_148 = arith.constant 0 : index
    %c112_149 = arith.constant 112 : index
    %140 = vector.load %arg10[%c0_148, %c112_149] : memref<8x512xf32, #tpu.memory_space<vmem>>, vector<8x256xf32>
    %c8_150 = arith.constant 8 : index
    %c0_151 = arith.constant 0 : index
    %141 = vector.load %arg12[%c8_150, %c0_151] : memref<72x256xf32, #tpu.memory_space<vmem>>, vector<8x256xf32>
    tpu.vector_store %arg12[%c8_150, %c0_151], %140 {strides = array<i32>} : memref<72x256xf32, #tpu.memory_space<vmem>>, vector<8x256xf32>,
    %c0_152 = arith.constant 0 : index
    %c113_153 = arith.constant 113 : index
    %142 = vector.load %arg10[%c0_152, %c113_153] : memref<8x512xf32, #tpu.memory_space<vmem>>, vector<8x256xf32>
    %143 = vector.broadcast %15 : vector<1x256xf32> to vector<8x256xf32>
    %144 = arith.mulf %142, %143 : vector<8x256xf32>
    %c16_154 = arith.constant 16 : index
    %c0_155 = arith.constant 0 : index
    %145 = vector.load %arg12[%c16_154, %c0_155] : memref<72x256xf32, #tpu.memory_space<vmem>>, vector<8x256xf32>
    tpu.vector_store %arg12[%c16_154, %c0_155], %144 {strides = array<i32>} : memref<72x256xf32, #tpu.memory_space<vmem>>, vector<8x256xf32>,
    %c0_156 = arith.constant 0 : index
    %c127_157 = arith.constant 127 : index
    %146 = vector.load %arg10[%c0_156, %c127_157] : memref<8x512xf32, #tpu.memory_space<vmem>>, vector<8x256xf32>
    %147 = vector.broadcast %14 : vector<1x256xf32> to vector<8x256xf32>
    %148 = arith.mulf %146, %147 : vector<8x256xf32>
    %c24_158 = arith.constant 24 : index
    %c0_159 = arith.constant 0 : index
    %149 = vector.load %arg12[%c24_158, %c0_159] : memref<72x256xf32, #tpu.memory_space<vmem>>, vector<8x256xf32>
    tpu.vector_store %arg12[%c24_158, %c0_159], %148 {strides = array<i32>} : memref<72x256xf32, #tpu.memory_space<vmem>>, vector<8x256xf32>,
    %c0_160 = arith.constant 0 : index
    %c128_161 = arith.constant 128 : index
    %150 = vector.load %arg10[%c0_160, %c128_161] : memref<8x512xf32, #tpu.memory_space<vmem>>, vector<8x256xf32>
    %c32_162 = arith.constant 32 : index
    %c0_163 = arith.constant 0 : index
    %151 = vector.load %arg12[%c32_162, %c0_163] : memref<72x256xf32, #tpu.memory_space<vmem>>, vector<8x256xf32>
    tpu.vector_store %arg12[%c32_162, %c0_163], %150 {strides = array<i32>} : memref<72x256xf32, #tpu.memory_space<vmem>>, vector<8x256xf32>,
    %c0_164 = arith.constant 0 : index
    %c129_165 = arith.constant 129 : index
    %152 = vector.load %arg10[%c0_164, %c129_165] : memref<8x512xf32, #tpu.memory_space<vmem>>, vector<8x256xf32>
    %153 = vector.broadcast %15 : vector<1x256xf32> to vector<8x256xf32>
    %154 = arith.mulf %152, %153 : vector<8x256xf32>
    %c40_166 = arith.constant 40 : index
    %c0_167 = arith.constant 0 : index
    %155 = vector.load %arg12[%c40_166, %c0_167] : memref<72x256xf32, #tpu.memory_space<vmem>>, vector<8x256xf32>
    tpu.vector_store %arg12[%c40_166, %c0_167], %154 {strides = array<i32>} : memref<72x256xf32, #tpu.memory_space<vmem>>, vector<8x256xf32>,
    %c0_168 = arith.constant 0 : index
    %c143_169 = arith.constant 143 : index
    %156 = vector.load %arg10[%c0_168, %c143_169] : memref<8x512xf32, #tpu.memory_space<vmem>>, vector<8x256xf32>
    %157 = vector.broadcast %14 : vector<1x256xf32> to vector<8x256xf32>
    %158 = arith.mulf %156, %157 : vector<8x256xf32>
    %c48_170 = arith.constant 48 : index
    %c0_171 = arith.constant 0 : index
    %159 = vector.load %arg12[%c48_170, %c0_171] : memref<72x256xf32, #tpu.memory_space<vmem>>, vector<8x256xf32>
    tpu.vector_store %arg12[%c48_170, %c0_171], %158 {strides = array<i32>} : memref<72x256xf32, #tpu.memory_space<vmem>>, vector<8x256xf32>,
    %c0_172 = arith.constant 0 : index
    %c144_173 = arith.constant 144 : index
    %160 = vector.load %arg10[%c0_172, %c144_173] : memref<8x512xf32, #tpu.memory_space<vmem>>, vector<8x256xf32>
    %c56_174 = arith.constant 56 : index
    %c0_175 = arith.constant 0 : index
    %161 = vector.load %arg12[%c56_174, %c0_175] : memref<72x256xf32, #tpu.memory_space<vmem>>, vector<8x256xf32>
    tpu.vector_store %arg12[%c56_174, %c0_175], %160 {strides = array<i32>} : memref<72x256xf32, #tpu.memory_space<vmem>>, vector<8x256xf32>,
    %c0_176 = arith.constant 0 : index
    %c145_177 = arith.constant 145 : index
    %162 = vector.load %arg10[%c0_176, %c145_177] : memref<8x512xf32, #tpu.memory_space<vmem>>, vector<8x256xf32>
    %163 = vector.broadcast %15 : vector<1x256xf32> to vector<8x256xf32>
    %164 = arith.mulf %162, %163 : vector<8x256xf32>
    %c64_178 = arith.constant 64 : index
    %c0_179 = arith.constant 0 : index
    %165 = vector.load %arg12[%c64_178, %c0_179] : memref<72x256xf32, #tpu.memory_space<vmem>>, vector<8x256xf32>
    tpu.vector_store %arg12[%c64_178, %c0_179], %164 {strides = array<i32>} : memref<72x256xf32, #tpu.memory_space<vmem>>, vector<8x256xf32>,
    %c0_180 = arith.constant 0 : index
    %c0_181 = arith.constant 0 : index
    %166 = vector.load %arg12[%c0_180, %c0_181] : memref<72x256xf32, #tpu.memory_space<vmem>>, vector<72x256xf32>
    %cst_182 = arith.constant dense<0.000000e+00> : vector<8x256xf32>
    %167 = tpu.matmul %9, %166, %cst_182 {dimension_numbers = #tpu.dot_dimension_numbers<[1], [0], [0], [1], [0, 0, 1, 1], [], []>} : vector<8x72xf32>, vector<72x256xf32>, vector<8x256xf32> -> vector<8x256xf32>
    %168 = vector.broadcast %11 : vector<8x1xf32> to vector<8x256xf32>
    %169 = arith.addf %167, %168 : vector<8x256xf32>
    %170 = arith.addf %169, %97 : vector<8x256xf32>
    %cst_183 = arith.constant 0.000000e+00 : f32
    %171 = vector.broadcast %cst_183 : f32 to vector<8x256xf32>
    %172 = arith.maximumf %170, %171 : vector<8x256xf32>
    %c1_184 = arith.constant 1 : index
    %c0_185 = arith.constant 0 : index
    %c0_186 = arith.constant 0 : index
    %173 = vector.load %arg8[%c1_184, %c0_185, %c0_186] : memref<2x8x256xf32, #tpu.memory_space<vmem>>, vector<1x8x256xf32>
    %174 = vector.shape_cast %173 : vector<1x8x256xf32> to vector<8x256xf32>
    %175 = vector.shape_cast %172 : vector<8x256xf32> to vector<1x8x256xf32>
    tpu.vector_store %arg8[%c1_184, %c0_185, %c0_186], %175 {strides = array<i32>} : memref<2x8x256xf32, #tpu.memory_space<vmem>>, vector<1x8x256xf32>,
    return
  }
  func.func @transform_0(%arg0: i32) -> (i32, i32, i32) {
    %c0_i32 = arith.constant 0 : i32
    %c0_i32_0 = arith.constant 0 : i32
    %c0_i32_1 = arith.constant 0 : i32
    return %arg0, %c0_i32, %c0_i32_0 : i32, i32, i32
  }
  func.func @transform_1(%arg0: i32) -> (i32, i32) {
    %c0_i32 = arith.constant 0 : i32
    %c0_i32_0 = arith.constant 0 : i32
    %c0_i32_1 = arith.constant 0 : i32
    return %c0_i32, %c0_i32_0 : i32, i32
  }
  func.func @transform_2(%arg0: i32) -> (i32, i32) {
    %c0_i32 = arith.constant 0 : i32
    %c0_i32_0 = arith.constant 0 : i32
    %c0_i32_1 = arith.constant 0 : i32
    return %c0_i32, %c0_i32_0 : i32, i32
  }
  func.func @transform_3(%arg0: i32) -> (i32, i32) {
    %c0_i32 = arith.constant 0 : i32
    %c0_i32_0 = arith.constant 0 : i32
    %c0_i32_1 = arith.constant 0 : i32
    return %c0_i32, %c0_i32_0 : i32, i32
  }
  func.func @transform_4(%arg0: i32) -> (i32, i32) {
    %c0_i32 = arith.constant 0 : i32
    %c0_i32_0 = arith.constant 0 : i32
    %c0_i32_1 = arith.constant 0 : i32
    return %c0_i32, %c0_i32_0 : i32, i32
  }
  func.func @transform_5(%arg0: i32) -> (i32, i32) {
    %c0_i32 = arith.constant 0 : i32
    %c0_i32_0 = arith.constant 0 : i32
    %c0_i32_1 = arith.constant 0 : i32
    return %c0_i32, %c0_i32_0 : i32, i32
  }
  func.func @transform_6(%arg0: i32) -> (i32, i32) {
    %c0_i32 = arith.constant 0 : i32
    %c0_i32_0 = arith.constant 0 : i32
    %c0_i32_1 = arith.constant 0 : i32
    return %c0_i32, %c0_i32_0 : i32, i32
  }
  func.func @transform_7(%arg0: i32) -> (i32, i32, i32) {
    %c0_i32 = arith.constant 0 : i32
    %c0_i32_0 = arith.constant 0 : i32
    %c0_i32_1 = arith.constant 0 : i32
    return %arg0, %c0_i32, %c0_i32_0 : i32, i32, i32
  }
}

</mosaic_0001>

<llo_original>
// kernel: tpu_custom_call.1
$region0: #{tpu_custom_call.1}
  #allocation0 [shape = 'u32[]', space=smem, size = 0x4, offset = 0x4, fixed_abs, tag = 'smem constant byte address 0x4 - core index']
  #allocation1 [shape = 'u32[144,128]{1,0:T(1,128)}', space=vmem, size = 0x12000, scoped, tag = 'internal scratch']
  #allocation2 [shape = 'f32[8,512]{1,0:T(8,128)}', space=vmem, size = 0x4000, scoped, tag = 'scratch operand']
  #allocation3 [shape = 'f32[8,512]{1,0:T(8,128)}', space=vmem, size = 0x4000, scoped, tag = 'scratch operand']
  #allocation4 [shape = 'f32[72,256]{1,0:T(8,128)}', space=vmem, size = 0x12000, scoped, tag = 'scratch operand']
  #allocation5 [shape = 'f32[72,256]{1,0:T(8,128)}', space=vmem, size = 0x12000, scoped, tag = 'scratch operand']
  %s0 = inlined_call_operand.hbm [shape: f32[4,8,256], index: 0, kind: input, shape index: {}]
  %s1 = inlined_call_operand.vmem [shape: f32[8,72], index: 1, kind: input, shape index: {}]
  %s2 = inlined_call_operand.vmem [shape: f32[8,1], index: 2, kind: input, shape index: {}]
  %s3 = inlined_call_operand.vmem [shape: f32[8,72], index: 3, kind: input, shape index: {}]
  %s4 = inlined_call_operand.vmem [shape: f32[8,1], index: 4, kind: input, shape index: {}]
  %s5 = inlined_call_operand.vmem [shape: f32[2,256], index: 5, kind: input, shape index: {}]
  %s6 = inlined_call_operand.vmem [shape: f32[2,256], index: 6, kind: input, shape index: {}]
  %s7 = inlined_call_operand.hbm [shape: f32[4,8,256], index: 7, kind: output, shape index: {}]
  %s8 = sld [smem:[#allocation0]]
  $region65: #{tpu_custom_call.1} parent=0
    _
  %s10 = ssub.s32 1, %s8
  %s11 = scalar_select 0, %s10, %s8
  $region1: #{tpu_custom_call.1} parent=0
    #allocation6 [shape = 'u8[32768]{0}', space=vmem, size = 0x8000, scoped, tag = 'input window, operand 0']
    #allocation7 [shape = 's32[2]{0}', space=sflag, size = 0x8, scoped, tag = 'scoped memory for tpu_custom_call.1']
    #allocation8 [shape = 's32[2]{0}', space=sflag, size = 0x8, scoped, tag = 'scoped memory for tpu_custom_call.1']
    #allocation9 [shape = 'u8[32768]{0}', space=vmem, size = 0x8000, scoped, tag = 'output window, operand 0']
    %12 = vsyncpa [#allocation7], 0
    %s13 = scalar_lea.sflag [#allocation7], 1
    %14 = vsyncpa %s13, 0
    %15 = vsyncpa [#allocation8], 0
    %s16 = scalar_lea.sflag [#allocation8], 1
    %17 = vsyncpa %s16, 0
    loop: start=0, step=1, limit=4
    $region2: #{tpu_custom_call.1} parent=1 // loop_pre_header
      _
    $region3: #{tpu_custom_call.1} parent=1 // loop_header
      %s19 = sphi 0, %s23
      %p20 = scmp.ge.s32.totalorder %s19, 4
      %s29 = sphi 0, %s31
      %s32 = sphi 0, %s29
      %s33 = sphi 0, %s32
      %s49 = sphi 0, %s33
      %s53 = sphi 0, %s53
      %s55 = sphi 0, %s53
      %s56 = sphi 0, %s55
      %s70 = sphi 0, %s56
      %s74 = sphi 0, %s74
      %s76 = sphi 0, %s74
      %s77 = sphi 0, %s76
      %s91 = sphi 0, %s77
      %s95 = sphi 0, %s95
      %s97 = sphi 0, %s95
      %s98 = sphi 0, %s97
      %s112 = sphi 0, %s98
      %s116 = sphi 0, %s116
      %s118 = sphi 0, %s116
      %s119 = sphi 0, %s118
      %s133 = sphi 0, %s119
      %s137 = sphi 0, %s137
      %s139 = sphi 0, %s137
      %s140 = sphi 0, %s139
      %s154 = sphi 0, %s140
      %s158 = sphi 0, %s158
      %s160 = sphi 0, %s158
      %s161 = sphi 0, %s160
      %s175 = sphi 0, %s161
      %s181 = sphi 0, %s183
      %s184 = sphi 0, %s181
      %s185 = sphi 0, %s184
      %s201 = sphi 0, %s185
    $region4: #{tpu_custom_call.1} parent=1 // loop_header_branch
      %22 = sbr.rel (%p20) target = $region8
    $region5: #{tpu_custom_call.1} parent=1 // loop_body
      %s24 = ssub.s32 %s19, 1
      %s25 = ssub.s32 %s19, 2
      %s26 = sadd.s32 %s19, 1
      %s27 = ssub.s32 %s19, %s26
      %p28 = scmp.eq.s32.totalorder %s27, 0
      %s30 = sadd.s32 %s29, 1
      %s31 = scalar_select %p28, %s29, %s30
      %p34 = pneg %p28
      %p35 = scmp.eq.s32.totalorder %s19, 1
      %p36 = por %p34, %p35
      %p37 = scmp.ne.s32.totalorder %s29, %s32
      %p38 = scmp.eq.s32.totalorder %s19, 0
      %p39 = por %p37, %p38
      %p40 = scmp.ne.s32.totalorder %s29, %s32
      %p41 = scmp.eq.s32.totalorder %s24, 1
      %p42 = por %p40, %p41
      %p43 = scmp.ne.s32.totalorder %s32, %s33
      %p44 = scmp.eq.s32.totalorder %s24, 0
      %p45 = por %p43, %p44
      %p46 = scmp.ne.s32.totalorder %s32, %s33
      %p47 = scmp.eq.s32.totalorder %s25, 1
      %p48 = por %p46, %p47
      %p50 = scmp.ne.s32.totalorder %s33, %s49
      %p51 = scmp.eq.s32.totalorder %s25, 0
      %p52 = por %p50, %p51
      %s54 = sadd.s32 %s53, 1
      %p57 = scmp.eq.s32.totalorder %s19, 1
      %p58 = scmp.ne.s32.totalorder %s53, %s55
      %p59 = scmp.eq.s32.totalorder %s19, 0
      %p60 = por %p58, %p59
      %p61 = scmp.ne.s32.totalorder %s53, %s55
      %p62 = scmp.eq.s32.totalorder %s24, 1
      %p63 = por %p61, %p62
      %p64 = scmp.ne.s32.totalorder %s55, %s56
      %p65 = scmp.eq.s32.totalorder %s24, 0
      %p66 = por %p64, %p65
      %p67 = scmp.ne.s32.totalorder %s55, %s56
      %p68 = scmp.eq.s32.totalorder %s25, 1
      %p69 = por %p67, %p68
      %p71 = scmp.ne.s32.totalorder %s56, %s70
      %p72 = scmp.eq.s32.totalorder %s25, 0
      %p73 = por %p71, %p72
      %s75 = sadd.s32 %s74, 1
      %p78 = scmp.eq.s32.totalorder %s19, 1
      %p79 = scmp.ne.s32.totalorder %s74, %s76
      %p80 = scmp.eq.s32.totalorder %s19, 0
      %p81 = por %p79, %p80
      %p82 = scmp.ne.s32.totalorder %s74, %s76
      %p83 = scmp.eq.s32.totalorder %s24, 1
      %p84 = por %p82, %p83
      %p85 = scmp.ne.s32.totalorder %s76, %s77
      %p86 = scmp.eq.s32.totalorder %s24, 0
      %p87 = por %p85, %p86
      %p88 = scmp.ne.s32.totalorder %s76, %s77
      %p89 = scmp.eq.s32.totalorder %s25, 1
      %p90 = por %p88, %p89
      %p92 = scmp.ne.s32.totalorder %s77, %s91
      %p93 = scmp.eq.s32.totalorder %s25, 0
      %p94 = por %p92, %p93
      %s96 = sadd.s32 %s95, 1
      %p99 = scmp.eq.s32.totalorder %s19, 1
      %p100 = scmp.ne.s32.totalorder %s95, %s97
      %p101 = scmp.eq.s32.totalorder %s19, 0
      %p102 = por %p100, %p101
      %p103 = scmp.ne.s32.totalorder %s95, %s97
      %p104 = scmp.eq.s32.totalorder %s24, 1
      %p105 = por %p103, %p104
      %p106 = scmp.ne.s32.totalorder %s97, %s98
      %p107 = scmp.eq.s32.totalorder %s24, 0
      %p108 = por %p106, %p107
      %p109 = scmp.ne.s32.totalorder %s97, %s98
      %p110 = scmp.eq.s32.totalorder %s25, 1
      %p111 = por %p109, %p110
      %p113 = scmp.ne.s32.totalorder %s98, %s112
      %p114 = scmp.eq.s32.totalorder %s25, 0
      %p115 = por %p113, %p114
      %s117 = sadd.s32 %s116, 1
      %p120 = scmp.eq.s32.totalorder %s19, 1
      %p121 = scmp.ne.s32.totalorder %s116, %s118
      %p122 = scmp.eq.s32.totalorder %s19, 0
      %p123 = por %p121, %p122
      %p124 = scmp.ne.s32.totalorder %s116, %s118
      %p125 = scmp.eq.s32.totalorder %s24, 1
      %p126 = por %p124, %p125
      %p127 = scmp.ne.s32.totalorder %s118, %s119
      %p128 = scmp.eq.s32.totalorder %s24, 0
      %p129 = por %p127, %p128
      %p130 = scmp.ne.s32.totalorder %s118, %s119
      %p131 = scmp.eq.s32.totalorder %s25, 1
      %p132 = por %p130, %p131
      %p134 = scmp.ne.s32.totalorder %s119, %s133
      %p135 = scmp.eq.s32.totalorder %s25, 0
      %p136 = por %p134, %p135
      %s138 = sadd.s32 %s137, 1
      %p141 = scmp.eq.s32.totalorder %s19, 1
      %p142 = scmp.ne.s32.totalorder %s137, %s139
      %p143 = scmp.eq.s32.totalorder %s19, 0
      %p144 = por %p142, %p143
      %p145 = scmp.ne.s32.totalorder %s137, %s139
      %p146 = scmp.eq.s32.totalorder %s24, 1
      %p147 = por %p145, %p146
      %p148 = scmp.ne.s32.totalorder %s139, %s140
      %p149 = scmp.eq.s32.totalorder %s24, 0
      %p150 = por %p148, %p149
      %p151 = scmp.ne.s32.totalorder %s139, %s140
      %p152 = scmp.eq.s32.totalorder %s25, 1
      %p153 = por %p151, %p152
      %p155 = scmp.ne.s32.totalorder %s140, %s154
      %p156 = scmp.eq.s32.totalorder %s25, 0
      %p157 = por %p155, %p156
      %s159 = sadd.s32 %s158, 1
      %p162 = scmp.eq.s32.totalorder %s19, 1
      %p163 = scmp.ne.s32.totalorder %s158, %s160
      %p164 = scmp.eq.s32.totalorder %s19, 0
      %p165 = por %p163, %p164
      %p166 = scmp.ne.s32.totalorder %s158, %s160
      %p167 = scmp.eq.s32.totalorder %s24, 1
      %p168 = por %p166, %p167
      %p169 = scmp.ne.s32.totalorder %s160, %s161
      %p170 = scmp.eq.s32.totalorder %s24, 0
      %p171 = por %p169, %p170
      %p172 = scmp.ne.s32.totalorder %s160, %s161
      %p173 = scmp.eq.s32.totalorder %s25, 1
      %p174 = por %p172, %p173
      %p176 = scmp.ne.s32.totalorder %s161, %s175
      %p177 = scmp.eq.s32.totalorder %s25, 0
      %p178 = por %p176, %p177
      %s179 = ssub.s32 %s19, %s26
      %p180 = scmp.eq.s32.totalorder %s179, 0
      %s182 = sadd.s32 %s181, 1
      %s183 = scalar_select %p180, %s181, %s182
      %p186 = pneg %p180
      %p187 = scmp.eq.s32.totalorder %s19, 1
      %p188 = por %p186, %p187
      %p189 = scmp.ne.s32.totalorder %s181, %s184
      %p190 = scmp.eq.s32.totalorder %s19, 0
      %p191 = por %p189, %p190
      %p192 = scmp.ne.s32.totalorder %s181, %s184
      %p193 = scmp.eq.s32.totalorder %s24, 1
      %p194 = por %p192, %p193
      %p195 = scmp.ne.s32.totalorder %s184, %s185
      %p196 = scmp.eq.s32.totalorder %s24, 0
      %p197 = por %p195, %p196
      %p198 = scmp.ne.s32.totalorder %s184, %s185
      %p199 = scmp.eq.s32.totalorder %s25, 1
      %p200 = por %p198, %p199
      %p202 = scmp.ne.s32.totalorder %s185, %s201
      %p203 = scmp.eq.s32.totalorder %s25, 0
      %p204 = por %p202, %p203
      %p205 = scmp.le.s32.totalorder 1, %s19
      %p206 = scmp.lt.s32.totalorder %s19, 3
      %p207 = pnand %p205, %p206
      %p208 = pneg %p207
      // Predicated region
      $region9: #{tpu_custom_call.1} parent=5 // pred_check
        _
      $region10: #{tpu_custom_call.1} parent=5 // pred_check_branch
        %210 = sbr.rel (%p207) target = $region12
      $region11: #{tpu_custom_call.1} parent=5 // pred_region
        %s211 = ssub.s32 %s19, 1
        // Predicated region
        $region13: #{tpu_custom_call.1} parent=11 // pred_check
          %p212 = pneg %p66
        $region14: #{tpu_custom_call.1} parent=11 // pred_check_branch
          %214 = sbr.rel (%p212) target = $region16
        $region15: #{tpu_custom_call.1} parent=11 // pred_region
          _
        $region16: #{tpu_custom_call.1} parent=11 // pred_fallthru
          _
        // Predicated region
        $region17: #{tpu_custom_call.1} parent=11 // pred_check
          %p215 = pneg %p87
        $region18: #{tpu_custom_call.1} parent=11 // pred_check_branch
          %217 = sbr.rel (%p215) target = $region20
        $region19: #{tpu_custom_call.1} parent=11 // pred_region
          _
        $region20: #{tpu_custom_call.1} parent=11 // pred_fallthru
          _
        // Predicated region
        $region21: #{tpu_custom_call.1} parent=11 // pred_check
          %p218 = pneg %p108
        $region22: #{tpu_custom_call.1} parent=11 // pred_check_branch
          %220 = sbr.rel (%p218) target = $region24
        $region23: #{tpu_custom_call.1} parent=11 // pred_region
          _
        $region24: #{tpu_custom_call.1} parent=11 // pred_fallthru
          _
        // Predicated region
        $region25: #{tpu_custom_call.1} parent=11 // pred_check
          %p221 = pneg %p129
        $region26: #{tpu_custom_call.1} parent=11 // pred_check_branch
          %223 = sbr.rel (%p221) target = $region28
        $region27: #{tpu_custom_call.1} parent=11 // pred_region
          _
        $region28: #{tpu_custom_call.1} parent=11 // pred_fallthru
          _
        // Predicated region
        $region29: #{tpu_custom_call.1} parent=11 // pred_check
          %p224 = pneg %p150
        $region30: #{tpu_custom_call.1} parent=11 // pred_check_branch
          %226 = sbr.rel (%p224) target = $region32
        $region31: #{tpu_custom_call.1} parent=11 // pred_region
          _
        $region32: #{tpu_custom_call.1} parent=11 // pred_fallthru
          _
        // Predicated region
        $region33: #{tpu_custom_call.1} parent=11 // pred_check
          %p227 = pneg %p171
        $region34: #{tpu_custom_call.1} parent=11 // pred_check_branch
          %229 = sbr.rel (%p227) target = $region36
        $region35: #{tpu_custom_call.1} parent=11 // pred_region
          _
        $region36: #{tpu_custom_call.1} parent=11 // pred_fallthru
          _
      $region12: #{tpu_custom_call.1} parent=5 // pred_fallthru
        _
      %p230 = scmp.lt.s32.totalorder %s19, 2
      // Predicated region
      $region37: #{tpu_custom_call.1} parent=5 // pred_check
        %p231 = pneg %p230
      $region38: #{tpu_custom_call.1} parent=5 // pred_check_branch
        %233 = sbr.rel (%p231) target = $region40
      $region39: #{tpu_custom_call.1} parent=5 // pred_region
        // Predicated region
        $region41: #{tpu_custom_call.1} parent=39 // pred_check
          %p234 = pneg %p39
        $region42: #{tpu_custom_call.1} parent=39 // pred_check_branch
          %236 = sbr.rel (%p234) target = $region44
        $region43: #{tpu_custom_call.1} parent=39 // pred_region
          %s237 = sand.u32 %s29, 1
          %s238 = scalar_lea.sflag [#allocation7], %s237
          %s239 = sand.u32 %s29, 1
          %s240 = smul.addr %s239, 32
          %s241 = scalar_lea.vmem [#allocation6], %s240
          %s242 = smul.u32 2, %s19
          %s244 = ssub.s32 512, 512
          %245 = vsyncadd %s238, %s244
          %s246 = smul.addr %s242, 2
          %s247 = smul.addr %s246, 128
          %s248 = scalar_lea.hbm %s0, %s247
          %s249 = sshll.u32 %s241, 4
          %s250 = int_to_ptr.vmem [resolvable:$true] %s249
          %255 = dma.hbm_to_vmem [thread:$0]  %s248, 512, %s250, %s238, 256, 256, 16
        $region44: #{tpu_custom_call.1} parent=39 // pred_fallthru
          _
      $region40: #{tpu_custom_call.1} parent=5 // pred_fallthru
        _
      %p256 = scmp.le.s32.totalorder 1, %s19
      %p257 = scmp.lt.s32.totalorder %s19, 3
      %p258 = pnand %p256, %p257
      %p259 = pneg %p258
      // Predicated region
      $region45: #{tpu_custom_call.1} parent=5 // pred_check
        _
      $region46: #{tpu_custom_call.1} parent=5 // pred_check_branch
        %261 = sbr.rel (%p258) target = $region48
      $region47: #{tpu_custom_call.1} parent=5 // pred_region
        %s262 = ssub.s32 %s19, 1
        %s263 = sand.u32 %s32, 1
        %s264 = scalar_lea.sflag [#allocation7], %s263
        %s265 = sand.u32 %s32, 1
        %s266 = smul.addr %s265, 32
        %s267 = scalar_lea.vmem [#allocation6], %s266
        // Predicated region
        $region49: #{tpu_custom_call.1} parent=47 // pred_check
          %p268 = pneg %p45
        $region50: #{tpu_custom_call.1} parent=47 // pred_check_branch
          %270 = sbr.rel (%p268) target = $region52
        $region51: #{tpu_custom_call.1} parent=47 // pred_region
          %271 = dma.done %s264, 512
        $region52: #{tpu_custom_call.1} parent=47 // pred_fallthru
          _
        %s272 = sand.u32 %s32, 1
        %s273 = scalar_lea.sflag [#allocation7], %s272
        %s274 = sand.u32 %s32, 1
        %s275 = smul.addr %s274, 32
        %s276 = scalar_lea.vmem [#allocation6], %s275
        %p277 = pneg %p45
        %p278 = pneg %p42
        %p279 = pneg %p66
        %p280 = pneg %p63
        %p281 = pneg %p87
        %p282 = pneg %p84
        %p283 = pneg %p108
        %p284 = pneg %p105
        %p285 = pneg %p129
        %p286 = pneg %p126
        %p287 = pneg %p150
        %p288 = pneg %p147
        %p289 = pneg %p171
        %p290 = pneg %p168
        %p291 = pneg %p197
        %p292 = pneg %p194
        %s293 = sand.u32 %s184, 1
        %s294 = scalar_lea.sflag [#allocation8], %s293
        %s295 = sand.u32 %s184, 1
        %s296 = smul.addr %s295, 32
        %s297 = scalar_lea.vmem [#allocation9], %s296
        %s298 = smul.u32 2, %s24
        %s299 = smul.u32 2, %s24
        %300 = vst [vmem:[#allocation2] sm:$0xff] 0.0
        %301 = vst [vmem:[#allocation2 + $0x18] sm:$0xff] 0.0
        %302 = vst [vmem:[#allocation3] sm:$0xff] 0.0
        %303 = vst [vmem:[#allocation3 + $0x18] sm:$0xff] 0.0
        %v304 = vld [vmem:[%s1] sm:$0xff]
        %v305 = vld [vmem:[%s3] sm:$0xff]
        %v306 = vld [vmem:[%s2] sm:$0xff]
        %v307 = vld [vmem:[%s4] sm:$0xff]
        %v308 = vld [vmem:[%s5] ss:$2 sm:$0x3]
        %s309 = scalar_lea.vmem %s5, 1
        %v310 = vld [vmem:[%s309] ss:$2 sm:$0x3]
        %v311 = vld [vmem:[%s6] ss:$2 sm:$0x3]
        %s312 = scalar_lea.vmem %s6, 1
        %v313 = vld [vmem:[%s312] ss:$2 sm:$0x3]
        %v314 = vld [vmem:[%s267] sm:$0xff]
        %v315 = vld [vmem:[%s267 + $0x8] sm:$0xff]
        %316 = vst [vmem:[#allocation2 + $0x8] sm:$0xff] %v314
        %317 = vst [vmem:[#allocation2 + $0x10] sm:$0xff] %v315
        %v318 = vld [vmem:[#allocation2] sm:$0xff]
        %v319 = vld [vmem:[#allocation2 + $0x8] sm:$0xff]
        %v320 = vld [vmem:[#allocation2 + $0x10] sm:$0xff]
        %v322 = vlaneseq
        %v323 = vshrl.u32 %v322, 7
        %v324 = vsub.s32 0, %v323
        %v325 = vrot.slane %v308, %v324
        %v326 = vlaneseq
        %v327 = vshrl.u32 %v326, 7
        %v328 = vsub.s32 1, %v327
        %v329 = vrot.slane %v308, %v328
        %330 = vrot.lane.b32.xlu0 %v325, 111
        %v331 = vpop.permute.xlu0 %330
        %332 = vrot.lane.b32.xlu0 %v329, 111
        %v333 = vpop.permute.xlu0 %332
        %vm334 = vcmask 908288
        %v335 = vsel %vm334, %v331, %v333
        %v339 = vmul.f32 %v318, %v331
        %v340 = vmul.f32 %v319, %v335
        %v341 = vmul.f32 %v320, %v333
        %345 = vrot.lane.b32.xlu0 %v339, 17
        %v346 = vpop.permute.xlu0 %345
        %347 = vrot.lane.b32.xlu0 %v340, 17
        %v348 = vpop.permute.xlu0 %347
        %349 = vrot.lane.b32.xlu0 %v341, 17
        %v350 = vpop.permute.xlu0 %349
        %vm351 = vcmask 138240
        %v352 = vsel %vm351, %v346, %v348
        %v353 = vsel %vm351, %v348, %v350
        %356 = vst [vmem:[#allocation4] sm:$0xff] %v352
        %357 = vst [vmem:[#allocation4 + $0x8] sm:$0xff] %v353
        %v358 = vld [vmem:[#allocation2] sm:$0xff]
        %v359 = vld [vmem:[#allocation2 + $0x8] sm:$0xff]
        %v360 = vld [vmem:[#allocation2 + $0x10] sm:$0xff]
        %364 = vrot.lane.b32.xlu0 %v358, 16
        %v365 = vpop.permute.xlu0 %364
        %366 = vrot.lane.b32.xlu0 %v359, 16
        %v367 = vpop.permute.xlu0 %366
        %368 = vrot.lane.b32.xlu0 %v360, 16
        %v369 = vpop.permute.xlu0 %368
        %vm370 = vcmask 130048
        %v371 = vsel %vm370, %v365, %v367
        %v372 = vsel %vm370, %v367, %v369
        %375 = vst [vmem:[#allocation4 + $0x10] sm:$0xff] %v371
        %376 = vst [vmem:[#allocation4 + $0x18] sm:$0xff] %v372
        %v377 = vld [vmem:[#allocation2] sm:$0xff]
        %v378 = vld [vmem:[#allocation2 + $0x8] sm:$0xff]
        %v379 = vld [vmem:[#allocation2 + $0x10] sm:$0xff]
        %v381 = vlaneseq
        %v382 = vshrl.u32 %v381, 7
        %v383 = vsub.s32 0, %v382
        %v384 = vrot.slane %v310, %v383
        %v385 = vlaneseq
        %v386 = vshrl.u32 %v385, 7
        %v387 = vsub.s32 1, %v386
        %v388 = vrot.slane %v310, %v387
        %389 = vrot.lane.b32.xlu0 %v384, 113
        %v390 = vpop.permute.xlu0 %389
        %391 = vrot.lane.b32.xlu0 %v388, 113
        %v392 = vpop.permute.xlu0 %391
        %vm393 = vcmask 924672
        %v394 = vsel %vm393, %v390, %v392
        %v398 = vmul.f32 %v377, %v390
        %v399 = vmul.f32 %v378, %v394
        %v400 = vmul.f32 %v379, %v392
        %404 = vrot.lane.b32.xlu0 %v398, 15
        %v405 = vpop.permute.xlu0 %404
        %406 = vrot.lane.b32.xlu0 %v399, 15
        %v407 = vpop.permute.xlu0 %406
        %408 = vrot.lane.b32.xlu0 %v400, 15
        %v409 = vpop.permute.xlu0 %408
        %vm410 = vcmask 121856
        %v411 = vsel %vm410, %v405, %v407
        %v412 = vsel %vm410, %v407, %v409
        %415 = vst [vmem:[#allocation4 + $0x20] sm:$0xff] %v411
        %416 = vst [vmem:[#allocation4 + $0x28] sm:$0xff] %v412
        %v417 = vld [vmem:[#allocation2] sm:$0xff]
        %v418 = vld [vmem:[#allocation2 + $0x8] sm:$0xff]
        %v419 = vld [vmem:[#allocation2 + $0x10] sm:$0xff]
        %420 = vrot.lane.b32.xlu0 %v325, 127
        %v421 = vpop.permute.xlu0 %420
        %422 = vrot.lane.b32.xlu0 %v329, 127
        %v423 = vpop.permute.xlu0 %422
        %vm424 = vcmask 1039360
        %v425 = vsel %vm424, %v421, %v423
        %v429 = vmul.f32 %v417, %v421
        %v430 = vmul.f32 %v418, %v425
        %v431 = vmul.f32 %v419, %v423
        %435 = vrot.lane.b32.xlu0 %v429, 1
        %v436 = vpop.permute.xlu0 %435
        %437 = vrot.lane.b32.xlu0 %v430, 1
        %v438 = vpop.permute.xlu0 %437
        %439 = vrot.lane.b32.xlu0 %v431, 1
        %v440 = vpop.permute.xlu0 %439
        %vm441 = vcmask 7168
        %v442 = vsel %vm441, %v436, %v438
        %v443 = vsel %vm441, %v438, %v440
        %446 = vst [vmem:[#allocation4 + $0x30] sm:$0xff] %v442
        %447 = vst [vmem:[#allocation4 + $0x38] sm:$0xff] %v443
        %v448 = vld [vmem:[#allocation2 + $0x8] sm:$0xff]
        %v449 = vld [vmem:[#allocation2 + $0x10] sm:$0xff]
        %450 = vst [vmem:[#allocation4 + $0x40] sm:$0xff] %v448
        %451 = vst [vmem:[#allocation4 + $0x48] sm:$0xff] %v449
        %v452 = vld [vmem:[#allocation2 + $0x8] sm:$0xff]
        %v453 = vld [vmem:[#allocation2 + $0x10] sm:$0xff]
        %v454 = vld [vmem:[#allocation2 + $0x18] sm:$0xff]
        %455 = vrot.lane.b32.xlu0 %v384, 1
        %v456 = vpop.permute.xlu0 %455
        %457 = vrot.lane.b32.xlu0 %v388, 1
        %v458 = vpop.permute.xlu0 %457
        %v459 = vsel %vm441, %v456, %v458
        %v463 = vmul.f32 %v452, %v456
        %v464 = vmul.f32 %v453, %v459
        %v465 = vmul.f32 %v454, %v458
        %469 = vrot.lane.b32.xlu0 %v463, 127
        %v470 = vpop.permute.xlu0 %469
        %471 = vrot.lane.b32.xlu0 %v464, 127
        %v472 = vpop.permute.xlu0 %471
        %473 = vrot.lane.b32.xlu0 %v465, 127
        %v474 = vpop.permute.xlu0 %473
        %v475 = vsel %vm424, %v470, %v472
        %v476 = vsel %vm424, %v472, %v474
        %479 = vst [vmem:[#allocation4 + $0x50] sm:$0xff] %v475
        %480 = vst [vmem:[#allocation4 + $0x58] sm:$0xff] %v476
        %v481 = vld [vmem:[#allocation2 + $0x8] sm:$0xff]
        %v482 = vld [vmem:[#allocation2 + $0x10] sm:$0xff]
        %v483 = vld [vmem:[#allocation2 + $0x18] sm:$0xff]
        %484 = vrot.lane.b32.xlu0 %v325, 15
        %v485 = vpop.permute.xlu0 %484
        %486 = vrot.lane.b32.xlu0 %v329, 15
        %v487 = vpop.permute.xlu0 %486
        %v488 = vsel %vm410, %v485, %v487
        %v492 = vmul.f32 %v481, %v485
        %v493 = vmul.f32 %v482, %v488
        %v494 = vmul.f32 %v483, %v487
        %498 = vrot.lane.b32.xlu0 %v492, 113
        %v499 = vpop.permute.xlu0 %498
        %500 = vrot.lane.b32.xlu0 %v493, 113
        %v501 = vpop.permute.xlu0 %500
        %502 = vrot.lane.b32.xlu0 %v494, 113
        %v503 = vpop.permute.xlu0 %502
        %v504 = vsel %vm393, %v499, %v501
        %v505 = vsel %vm393, %v501, %v503
        %508 = vst [vmem:[#allocation4 + $0x60] sm:$0xff] %v504
        %509 = vst [vmem:[#allocation4 + $0x68] sm:$0xff] %v505
        %v510 = vld [vmem:[#allocation2 + $0x8] sm:$0xff]
        %v511 = vld [vmem:[#allocation2 + $0x10] sm:$0xff]
        %v512 = vld [vmem:[#allocation2 + $0x18] sm:$0xff]
        %516 = vrot.lane.b32.xlu0 %v510, 112
        %v517 = vpop.permute.xlu0 %516
        %518 = vrot.lane.b32.xlu0 %v511, 112
        %v519 = vpop.permute.xlu0 %518
        %520 = vrot.lane.b32.xlu0 %v512, 112
        %v521 = vpop.permute.xlu0 %520
        %vm522 = vcmask 916480
        %v523 = vsel %vm522, %v517, %v519
        %v524 = vsel %vm522, %v519, %v521
        %527 = vst [vmem:[#allocation4 + $0x70] sm:$0xff] %v523
        %528 = vst [vmem:[#allocation4 + $0x78] sm:$0xff] %v524
        %v529 = vld [vmem:[#allocation2 + $0x8] sm:$0xff]
        %v530 = vld [vmem:[#allocation2 + $0x10] sm:$0xff]
        %v531 = vld [vmem:[#allocation2 + $0x18] sm:$0xff]
        %532 = vrot.lane.b32.xlu0 %v384, 17
        %v533 = vpop.permute.xlu0 %532
        %534 = vrot.lane.b32.xlu0 %v388, 17
        %v535 = vpop.permute.xlu0 %534
        %v536 = vsel %vm351, %v533, %v535
        %v540 = vmul.f32 %v529, %v533
        %v541 = vmul.f32 %v530, %v536
        %v542 = vmul.f32 %v531, %v535
        %546 = vrot.lane.b32.xlu0 %v540, 111
        %v547 = vpop.permute.xlu0 %546
        %548 = vrot.lane.b32.xlu0 %v541, 111
        %v549 = vpop.permute.xlu0 %548
        %550 = vrot.lane.b32.xlu0 %v542, 111
        %v551 = vpop.permute.xlu0 %550
        %v552 = vsel %vm334, %v547, %v549
        %v553 = vsel %vm334, %v549, %v551
        %556 = vst [vmem:[#allocation4 + $0x80] sm:$0xff] %v552
        %557 = vst [vmem:[#allocation4 + $0x88] sm:$0xff] %v553
        %v558 = vld [vmem:[#allocation4] sm:$0xff]
        %v559 = vld [vmem:[#allocation4 + $0x8] sm:$0xff]
        %v560 = vld [vmem:[#allocation4 + $0x10] sm:$0xff]
        %v561 = vld [vmem:[#allocation4 + $0x18] sm:$0xff]
        %v562 = vld [vmem:[#allocation4 + $0x20] sm:$0xff]
        %v563 = vld [vmem:[#allocation4 + $0x28] sm:$0xff]
        %v564 = vld [vmem:[#allocation4 + $0x30] sm:$0xff]
        %v565 = vld [vmem:[#allocation4 + $0x38] sm:$0xff]
        %v566 = vld [vmem:[#allocation4 + $0x40] sm:$0xff]
        %v567 = vld [vmem:[#allocation4 + $0x48] sm:$0xff]
        %v568 = vld [vmem:[#allocation4 + $0x50] sm:$0xff]
        %v569 = vld [vmem:[#allocation4 + $0x58] sm:$0xff]
        %v570 = vld [vmem:[#allocation4 + $0x60] sm:$0xff]
        %v571 = vld [vmem:[#allocation4 + $0x68] sm:$0xff]
        %v572 = vld [vmem:[#allocation4 + $0x70] sm:$0xff]
        %v573 = vld [vmem:[#allocation4 + $0x78] sm:$0xff]
        %v574 = vld [vmem:[#allocation4 + $0x80] sm:$0xff]
        %v575 = vld [vmem:[#allocation4 + $0x88] sm:$0xff]
        %577 = vset.pattern.permute.xlu0 0
        %578 = vperm.xlu0 %577, %v306
        %v579 = vpop.permute.xlu0 %578
        %vm581 = vcmask 588800
        %v583 = vsel %vm581, %v304, 0
        %585 = vmatprep.subr.mxu0 0.0
        %586 = vmatpush1.msra.mxu0 0.0
        %587 = vmatprep.subr.mxu0 0.0
        %588 = vmatpush1.msra.mxu0 0.0
        %589 = vmatprep.subr.mxu0 0.0
        %590 = vmatpush1.msra.mxu0 0.0
        %591 = vmatprep.subr.mxu0 0.0
        %592 = vmatpush1.msra.mxu0 0.0
        %593 = vmatprep.subr.mxu0 0.0
        %594 = vmatpush1.msra.mxu0 0.0
        %595 = vmatprep.subr.mxu0 0.0
        %596 = vmatpush1.msra.mxu0 0.0
        %597 = vmatprep.subr.mxu0 0.0
        %598 = vmatpush1.msra.mxu0 0.0
        %599 = vmatprep.subr.mxu0 %v575
        %600 = vmatpush1.msra.mxu0 %v574
        %601 = vmatprep.subr.mxu0 %v573
        %602 = vmatpush1.msra.mxu0 %v572
        %603 = vmatprep.subr.mxu0 %v571
        %604 = vmatpush1.msra.mxu0 %v570
        %605 = vmatprep.subr.mxu0 %v569
        %606 = vmatpush1.msra.mxu0 %v568
        %607 = vmatprep.subr.mxu0 %v567
        %608 = vmatpush1.msra.mxu0 %v566
        %609 = vmatprep.subr.mxu0 %v565
        %610 = vmatpush1.msra.mxu0 %v564
        %611 = vmatprep.subr.mxu0 %v563
        %612 = vmatpush1.msra.mxu0 %v562
        %613 = vmatprep.subr.mxu0 %v561
        %614 = vmatpush1.msra.mxu0 %v560
        %615 = vmatprep.subr.mxu0 %v559
        %616 = vmatpush1.msra.mxu0 %v558
        %617 = vmatprep.subr.mxu0 0.0
        %618 = vmatpush2.msra.mxu0 0.0
        %619 = vmatprep.subr.mxu0 0.0
        %620 = vmatpush2.msra.mxu0 0.0
        %621 = vmatprep.subr.mxu0 0.0
        %622 = vmatpush2.msra.mxu0 0.0
        %623 = vmatprep.subr.mxu0 0.0
        %624 = vmatpush2.msra.mxu0 0.0
        %625 = vmatprep.subr.mxu0 0.0
        %626 = vmatpush2.msra.mxu0 0.0
        %627 = vmatprep.subr.mxu0 0.0
        %628 = vmatpush2.msra.mxu0 0.0
        %629 = vmatprep.subr.mxu0 0.0
        %630 = vmatpush2.msra.mxu0 0.0
        %631 = vmatprep.subr.mxu0 0.0
        %632 = vmatpush2.msra.mxu0 0.0
        %633 = vmatprep.subr.mxu0 0.0
        %634 = vmatpush2.msra.mxu0 0.0
        %635 = vmatprep.subr.mxu0 0.0
        %636 = vmatpush2.msra.mxu0 0.0
        %637 = vmatprep.subr.mxu0 0.0
        %638 = vmatpush2.msra.mxu0 0.0
        %639 = vmatprep.subr.mxu0 0.0
        %640 = vmatpush2.msra.mxu0 0.0
        %641 = vmatprep.subr.mxu0 0.0
        %642 = vmatpush2.msra.mxu0 0.0
        %643 = vmatprep.subr.mxu0 0.0
        %644 = vmatpush2.msra.mxu0 0.0
        %645 = vmatprep.subr.mxu0 0.0
        %646 = vmatpush2.msra.mxu0 0.0
        %647 = vmatprep.subr.mxu0 0.0
        %648 = vmatpush2.msra.mxu0 0.0
        %649 = vmatprep.mubr.f32.mxu0 0.0
        %650 = vmatmul.mubr.f32.gmra.mxu0 %v583
        %v651 = vpop.f32.mrf.mxu0
        %v652 = vadd.f32 %v579, %v651
        %v653 = vpop.f32.mrf.mxu0
        %v654 = vadd.f32 %v579, %v653
        %655 = vdwg.mxu0
        %v656 = vmax.f32 %v652, 0.0
        %v657 = vmax.f32 %v654, 0.0
        %658 = vst [vmem:[#allocation3 + $0x8] sm:$0xff] %v656
        %659 = vst [vmem:[#allocation3 + $0x10] sm:$0xff] %v657
        %v660 = vld [vmem:[#allocation3] sm:$0xff]
        %v661 = vld [vmem:[#allocation3 + $0x8] sm:$0xff]
        %v662 = vld [vmem:[#allocation3 + $0x10] sm:$0xff]
        %v664 = vlaneseq
        %v665 = vshrl.u32 %v664, 7
        %v666 = vsub.s32 0, %v665
        %v667 = vrot.slane %v311, %v666
        %v668 = vlaneseq
        %v669 = vshrl.u32 %v668, 7
        %v670 = vsub.s32 1, %v669
        %v671 = vrot.slane %v311, %v670
        %672 = vrot.lane.b32.xlu0 %v667, 111
        %v673 = vpop.permute.xlu0 %672
        %674 = vrot.lane.b32.xlu0 %v671, 111
        %v675 = vpop.permute.xlu0 %674
        %v676 = vsel %vm334, %v673, %v675
        %v680 = vmul.f32 %v660, %v673
        %v681 = vmul.f32 %v661, %v676
        %v682 = vmul.f32 %v662, %v675
        %686 = vrot.lane.b32.xlu0 %v680, 17
        %v687 = vpop.permute.xlu0 %686
        %688 = vrot.lane.b32.xlu0 %v681, 17
        %v689 = vpop.permute.xlu0 %688
        %690 = vrot.lane.b32.xlu0 %v682, 17
        %v691 = vpop.permute.xlu0 %690
        %v692 = vsel %vm351, %v687, %v689
        %v693 = vsel %vm351, %v689, %v691
        %696 = vst [vmem:[#allocation5] sm:$0xff] %v692
        %697 = vst [vmem:[#allocation5 + $0x8] sm:$0xff] %v693
        %v698 = vld [vmem:[#allocation3] sm:$0xff]
        %v699 = vld [vmem:[#allocation3 + $0x8] sm:$0xff]
        %v700 = vld [vmem:[#allocation3 + $0x10] sm:$0xff]
        %704 = vrot.lane.b32.xlu0 %v698, 16
        %v705 = vpop.permute.xlu0 %704
        %706 = vrot.lane.b32.xlu0 %v699, 16
        %v707 = vpop.permute.xlu0 %706
        %708 = vrot.lane.b32.xlu0 %v700, 16
        %v709 = vpop.permute.xlu0 %708
        %v710 = vsel %vm370, %v705, %v707
        %v711 = vsel %vm370, %v707, %v709
        %714 = vst [vmem:[#allocation5 + $0x10] sm:$0xff] %v710
        %715 = vst [vmem:[#allocation5 + $0x18] sm:$0xff] %v711
        %v716 = vld [vmem:[#allocation3] sm:$0xff]
        %v717 = vld [vmem:[#allocation3 + $0x8] sm:$0xff]
        %v718 = vld [vmem:[#allocation3 + $0x10] sm:$0xff]
        %v720 = vlaneseq
        %v721 = vshrl.u32 %v720, 7
        %v722 = vsub.s32 0, %v721
        %v723 = vrot.slane %v313, %v722
        %v724 = vlaneseq
        %v725 = vshrl.u32 %v724, 7
        %v726 = vsub.s32 1, %v725
        %v727 = vrot.slane %v313, %v726
        %728 = vrot.lane.b32.xlu0 %v723, 113
        %v729 = vpop.permute.xlu0 %728
        %730 = vrot.lane.b32.xlu0 %v727, 113
        %v731 = vpop.permute.xlu0 %730
        %v732 = vsel %vm393, %v729, %v731
        %v736 = vmul.f32 %v716, %v729
        %v737 = vmul.f32 %v717, %v732
        %v738 = vmul.f32 %v718, %v731
        %742 = vrot.lane.b32.xlu0 %v736, 15
        %v743 = vpop.permute.xlu0 %742
        %744 = vrot.lane.b32.xlu0 %v737, 15
        %v745 = vpop.permute.xlu0 %744
        %746 = vrot.lane.b32.xlu0 %v738, 15
        %v747 = vpop.permute.xlu0 %746
        %v748 = vsel %vm410, %v743, %v745
        %v749 = vsel %vm410, %v745, %v747
        %752 = vst [vmem:[#allocation5 + $0x20] sm:$0xff] %v748
        %753 = vst [vmem:[#allocation5 + $0x28] sm:$0xff] %v749
        %v754 = vld [vmem:[#allocation3] sm:$0xff]
        %v755 = vld [vmem:[#allocation3 + $0x8] sm:$0xff]
        %v756 = vld [vmem:[#allocation3 + $0x10] sm:$0xff]
        %757 = vrot.lane.b32.xlu0 %v667, 127
        %v758 = vpop.permute.xlu0 %757
        %759 = vrot.lane.b32.xlu0 %v671, 127
        %v760 = vpop.permute.xlu0 %759
        %v761 = vsel %vm424, %v758, %v760
        %v765 = vmul.f32 %v754, %v758
        %v766 = vmul.f32 %v755, %v761
        %v767 = vmul.f32 %v756, %v760
        %771 = vrot.lane.b32.xlu0 %v765, 1
        %v772 = vpop.permute.xlu0 %771
        %773 = vrot.lane.b32.xlu0 %v766, 1
        %v774 = vpop.permute.xlu0 %773
        %775 = vrot.lane.b32.xlu0 %v767, 1
        %v776 = vpop.permute.xlu0 %775
        %v777 = vsel %vm441, %v772, %v774
        %v778 = vsel %vm441, %v774, %v776
        %781 = vst [vmem:[#allocation5 + $0x30] sm:$0xff] %v777
        %782 = vst [vmem:[#allocation5 + $0x38] sm:$0xff] %v778
        %v783 = vld [vmem:[#allocation3 + $0x8] sm:$0xff]
        %v784 = vld [vmem:[#allocation3 + $0x10] sm:$0xff]
        %785 = vst [vmem:[#allocation5 + $0x40] sm:$0xff] %v783
        %786 = vst [vmem:[#allocation5 + $0x48] sm:$0xff] %v784
        %v787 = vld [vmem:[#allocation3 + $0x8] sm:$0xff]
        %v788 = vld [vmem:[#allocation3 + $0x10] sm:$0xff]
        %v789 = vld [vmem:[#allocation3 + $0x18] sm:$0xff]
        %790 = vrot.lane.b32.xlu0 %v723, 1
        %v791 = vpop.permute.xlu0 %790
        %792 = vrot.lane.b32.xlu0 %v727, 1
        %v793 = vpop.permute.xlu0 %792
        %v794 = vsel %vm441, %v791, %v793
        %v798 = vmul.f32 %v787, %v791
        %v799 = vmul.f32 %v788, %v794
        %v800 = vmul.f32 %v789, %v793
        %804 = vrot.lane.b32.xlu0 %v798, 127
        %v805 = vpop.permute.xlu0 %804
        %806 = vrot.lane.b32.xlu0 %v799, 127
        %v807 = vpop.permute.xlu0 %806
        %808 = vrot.lane.b32.xlu0 %v800, 127
        %v809 = vpop.permute.xlu0 %808
        %v810 = vsel %vm424, %v805, %v807
        %v811 = vsel %vm424, %v807, %v809
        %814 = vst [vmem:[#allocation5 + $0x50] sm:$0xff] %v810
        %815 = vst [vmem:[#allocation5 + $0x58] sm:$0xff] %v811
        %v816 = vld [vmem:[#allocation3 + $0x8] sm:$0xff]
        %v817 = vld [vmem:[#allocation3 + $0x10] sm:$0xff]
        %v818 = vld [vmem:[#allocation3 + $0x18] sm:$0xff]
        %819 = vrot.lane.b32.xlu0 %v667, 15
        %v820 = vpop.permute.xlu0 %819
        %821 = vrot.lane.b32.xlu0 %v671, 15
        %v822 = vpop.permute.xlu0 %821
        %v823 = vsel %vm410, %v820, %v822
        %v827 = vmul.f32 %v816, %v820
        %v828 = vmul.f32 %v817, %v823
        %v829 = vmul.f32 %v818, %v822
        %833 = vrot.lane.b32.xlu0 %v827, 113
        %v834 = vpop.permute.xlu0 %833
        %835 = vrot.lane.b32.xlu0 %v828, 113
        %v836 = vpop.permute.xlu0 %835
        %837 = vrot.lane.b32.xlu0 %v829, 113
        %v838 = vpop.permute.xlu0 %837
        %v839 = vsel %vm393, %v834, %v836
        %v840 = vsel %vm393, %v836, %v838
        %843 = vst [vmem:[#allocation5 + $0x60] sm:$0xff] %v839
        %844 = vst [vmem:[#allocation5 + $0x68] sm:$0xff] %v840
        %v845 = vld [vmem:[#allocation3 + $0x8] sm:$0xff]
        %v846 = vld [vmem:[#allocation3 + $0x10] sm:$0xff]
        %v847 = vld [vmem:[#allocation3 + $0x18] sm:$0xff]
        %851 = vrot.lane.b32.xlu0 %v845, 112
        %v852 = vpop.permute.xlu0 %851
        %853 = vrot.lane.b32.xlu0 %v846, 112
        %v854 = vpop.permute.xlu0 %853
        %855 = vrot.lane.b32.xlu0 %v847, 112
        %v856 = vpop.permute.xlu0 %855
        %v857 = vsel %vm522, %v852, %v854
        %v858 = vsel %vm522, %v854, %v856
        %861 = vst [vmem:[#allocation5 + $0x70] sm:$0xff] %v857
        %862 = vst [vmem:[#allocation5 + $0x78] sm:$0xff] %v858
        %v863 = vld [vmem:[#allocation3 + $0x8] sm:$0xff]
        %v864 = vld [vmem:[#allocation3 + $0x10] sm:$0xff]
        %v865 = vld [vmem:[#allocation3 + $0x18] sm:$0xff]
        %866 = vrot.lane.b32.xlu0 %v723, 17
        %v867 = vpop.permute.xlu0 %866
        %868 = vrot.lane.b32.xlu0 %v727, 17
        %v869 = vpop.permute.xlu0 %868
        %v870 = vsel %vm351, %v867, %v869
        %v874 = vmul.f32 %v863, %v867
        %v875 = vmul.f32 %v864, %v870
        %v876 = vmul.f32 %v865, %v869
        %880 = vrot.lane.b32.xlu0 %v874, 111
        %v881 = vpop.permute.xlu0 %880
        %882 = vrot.lane.b32.xlu0 %v875, 111
        %v883 = vpop.permute.xlu0 %882
        %884 = vrot.lane.b32.xlu0 %v876, 111
        %v885 = vpop.permute.xlu0 %884
        %v886 = vsel %vm334, %v881, %v883
        %v887 = vsel %vm334, %v883, %v885
        %890 = vst [vmem:[#allocation5 + $0x80] sm:$0xff] %v886
        %891 = vst [vmem:[#allocation5 + $0x88] sm:$0xff] %v887
        %v892 = vld [vmem:[#allocation5] sm:$0xff]
        %v893 = vld [vmem:[#allocation5 + $0x8] sm:$0xff]
        %v894 = vld [vmem:[#allocation5 + $0x10] sm:$0xff]
        %v895 = vld [vmem:[#allocation5 + $0x18] sm:$0xff]
        %v896 = vld [vmem:[#allocation5 + $0x20] sm:$0xff]
        %v897 = vld [vmem:[#allocation5 + $0x28] sm:$0xff]
        %v898 = vld [vmem:[#allocation5 + $0x30] sm:$0xff]
        %v899 = vld [vmem:[#allocation5 + $0x38] sm:$0xff]
        %v900 = vld [vmem:[#allocation5 + $0x40] sm:$0xff]
        %v901 = vld [vmem:[#allocation5 + $0x48] sm:$0xff]
        %v902 = vld [vmem:[#allocation5 + $0x50] sm:$0xff]
        %v903 = vld [vmem:[#allocation5 + $0x58] sm:$0xff]
        %v904 = vld [vmem:[#allocation5 + $0x60] sm:$0xff]
        %v905 = vld [vmem:[#allocation5 + $0x68] sm:$0xff]
        %v906 = vld [vmem:[#allocation5 + $0x70] sm:$0xff]
        %v907 = vld [vmem:[#allocation5 + $0x78] sm:$0xff]
        %v908 = vld [vmem:[#allocation5 + $0x80] sm:$0xff]
        %v909 = vld [vmem:[#allocation5 + $0x88] sm:$0xff]
        %911 = vset.pattern.permute.xlu0 0
        %912 = vperm.xlu0 %911, %v307
        %v913 = vpop.permute.xlu0 %912
        %v916 = vsel %vm581, %v305, 0
        %918 = vmatprep.subr.mxu0 0.0
        %919 = vmatpush1.msra.mxu0 0.0
        %920 = vmatprep.subr.mxu0 0.0
        %921 = vmatpush1.msra.mxu0 0.0
        %922 = vmatprep.subr.mxu0 0.0
        %923 = vmatpush1.msra.mxu0 0.0
        %924 = vmatprep.subr.mxu0 0.0
        %925 = vmatpush1.msra.mxu0 0.0
        %926 = vmatprep.subr.mxu0 0.0
        %927 = vmatpush1.msra.mxu0 0.0
        %928 = vmatprep.subr.mxu0 0.0
        %929 = vmatpush1.msra.mxu0 0.0
        %930 = vmatprep.subr.mxu0 0.0
        %931 = vmatpush1.msra.mxu0 0.0
        %932 = vmatprep.subr.mxu0 %v909
        %933 = vmatpush1.msra.mxu0 %v908
        %934 = vmatprep.subr.mxu0 %v907
        %935 = vmatpush1.msra.mxu0 %v906
        %936 = vmatprep.subr.mxu0 %v905
        %937 = vmatpush1.msra.mxu0 %v904
        %938 = vmatprep.subr.mxu0 %v903
        %939 = vmatpush1.msra.mxu0 %v902
        %940 = vmatprep.subr.mxu0 %v901
        %941 = vmatpush1.msra.mxu0 %v900
        %942 = vmatprep.subr.mxu0 %v899
        %943 = vmatpush1.msra.mxu0 %v898
        %944 = vmatprep.subr.mxu0 %v897
        %945 = vmatpush1.msra.mxu0 %v896
        %946 = vmatprep.subr.mxu0 %v895
        %947 = vmatpush1.msra.mxu0 %v894
        %948 = vmatprep.subr.mxu0 %v893
        %949 = vmatpush1.msra.mxu0 %v892
        %950 = vmatprep.subr.mxu0 0.0
        %951 = vmatpush2.msra.mxu0 0.0
        %952 = vmatprep.subr.mxu0 0.0
        %953 = vmatpush2.msra.mxu0 0.0
        %954 = vmatprep.subr.mxu0 0.0
        %955 = vmatpush2.msra.mxu0 0.0
        %956 = vmatprep.subr.mxu0 0.0
        %957 = vmatpush2.msra.mxu0 0.0
        %958 = vmatprep.subr.mxu0 0.0
        %959 = vmatpush2.msra.mxu0 0.0
        %960 = vmatprep.subr.mxu0 0.0
        %961 = vmatpush2.msra.mxu0 0.0
        %962 = vmatprep.subr.mxu0 0.0
        %963 = vmatpush2.msra.mxu0 0.0
        %964 = vmatprep.subr.mxu0 0.0
        %965 = vmatpush2.msra.mxu0 0.0
        %966 = vmatprep.subr.mxu0 0.0
        %967 = vmatpush2.msra.mxu0 0.0
        %968 = vmatprep.subr.mxu0 0.0
        %969 = vmatpush2.msra.mxu0 0.0
        %970 = vmatprep.subr.mxu0 0.0
        %971 = vmatpush2.msra.mxu0 0.0
        %972 = vmatprep.subr.mxu0 0.0
        %973 = vmatpush2.msra.mxu0 0.0
        %974 = vmatprep.subr.mxu0 0.0
        %975 = vmatpush2.msra.mxu0 0.0
        %976 = vmatprep.subr.mxu0 0.0
        %977 = vmatpush2.msra.mxu0 0.0
        %978 = vmatprep.subr.mxu0 0.0
        %979 = vmatpush2.msra.mxu0 0.0
        %980 = vmatprep.subr.mxu0 0.0
        %981 = vmatpush2.msra.mxu0 0.0
        %982 = vmatprep.mubr.f32.mxu0 0.0
        %983 = vmatmul.mubr.f32.gmra.mxu0 %v916
        %v984 = vpop.f32.mrf.mxu0
        %v985 = vadd.f32 %v913, %v984
        %v986 = vpop.f32.mrf.mxu0
        %v987 = vadd.f32 %v913, %v986
        %988 = vdwg.mxu0
        %v989 = vadd.f32 %v985, %v314
        %v990 = vadd.f32 %v987, %v315
        %v991 = vmax.f32 %v989, 0.0
        %v992 = vmax.f32 %v990, 0.0
        %993 = vst [vmem:[%s297] sm:$0xff] %v991
        %994 = vst [vmem:[%s297 + $0x8] sm:$0xff] %v992
        %s995 = scalar_lea.vmem %s267, 16 [#allocation6]
        %v996 = vld [vmem:[%s995] sm:$0xff]
        %v997 = vld [vmem:[%s995 + $0x8] sm:$0xff]
        %998 = vst [vmem:[#allocation2 + $0x8] sm:$0xff] %v996
        %999 = vst [vmem:[#allocation2 + $0x10] sm:$0xff] %v997
        %v1000 = vld [vmem:[#allocation2] sm:$0xff]
        %v1001 = vld [vmem:[#allocation2 + $0x8] sm:$0xff]
        %v1002 = vld [vmem:[#allocation2 + $0x10] sm:$0xff]
        %v1003 = vmul.f32 %v1000, %v331
        %v1004 = vmul.f32 %v1001, %v335
        %v1005 = vmul.f32 %v1002, %v333
        %1009 = vrot.lane.b32.xlu0 %v1003, 17
        %v1010 = vpop.permute.xlu0 %1009
        %1011 = vrot.lane.b32.xlu0 %v1004, 17
        %v1012 = vpop.permute.xlu0 %1011
        %1013 = vrot.lane.b32.xlu0 %v1005, 17
        %v1014 = vpop.permute.xlu0 %1013
        %v1015 = vsel %vm351, %v1010, %v1012
        %v1016 = vsel %vm351, %v1012, %v1014
        %1019 = vst [vmem:[#allocation4] sm:$0xff] %v1015
        %1020 = vst [vmem:[#allocation4 + $0x8] sm:$0xff] %v1016
        %v1021 = vld [vmem:[#allocation2] sm:$0xff]
        %v1022 = vld [vmem:[#allocation2 + $0x8] sm:$0xff]
        %v1023 = vld [vmem:[#allocation2 + $0x10] sm:$0xff]
        %1027 = vrot.lane.b32.xlu0 %v1021, 16
        %v1028 = vpop.permute.xlu0 %1027
        %1029 = vrot.lane.b32.xlu0 %v1022, 16
        %v1030 = vpop.permute.xlu0 %1029
        %1031 = vrot.lane.b32.xlu0 %v1023, 16
        %v1032 = vpop.permute.xlu0 %1031
        %v1033 = vsel %vm370, %v1028, %v1030
        %v1034 = vsel %vm370, %v1030, %v1032
        %1037 = vst [vmem:[#allocation4 + $0x10] sm:$0xff] %v1033
        %1038 = vst [vmem:[#allocation4 + $0x18] sm:$0xff] %v1034
        %v1039 = vld [vmem:[#allocation2] sm:$0xff]
        %v1040 = vld [vmem:[#allocation2 + $0x8] sm:$0xff]
        %v1041 = vld [vmem:[#allocation2 + $0x10] sm:$0xff]
        %v1042 = vmul.f32 %v1039, %v390
        %v1043 = vmul.f32 %v1040, %v394
        %v1044 = vmul.f32 %v1041, %v392
        %1048 = vrot.lane.b32.xlu0 %v1042, 15
        %v1049 = vpop.permute.xlu0 %1048
        %1050 = vrot.lane.b32.xlu0 %v1043, 15
        %v1051 = vpop.permute.xlu0 %1050
        %1052 = vrot.lane.b32.xlu0 %v1044, 15
        %v1053 = vpop.permute.xlu0 %1052
        %v1054 = vsel %vm410, %v1049, %v1051
        %v1055 = vsel %vm410, %v1051, %v1053
        %1058 = vst [vmem:[#allocation4 + $0x20] sm:$0xff] %v1054
        %1059 = vst [vmem:[#allocation4 + $0x28] sm:$0xff] %v1055
        %v1060 = vld [vmem:[#allocation2] sm:$0xff]
        %v1061 = vld [vmem:[#allocation2 + $0x8] sm:$0xff]
        %v1062 = vld [vmem:[#allocation2 + $0x10] sm:$0xff]
        %v1063 = vmul.f32 %v1060, %v421
        %v1064 = vmul.f32 %v1061, %v425
        %v1065 = vmul.f32 %v1062, %v423
        %1069 = vrot.lane.b32.xlu0 %v1063, 1
        %v1070 = vpop.permute.xlu0 %1069
        %1071 = vrot.lane.b32.xlu0 %v1064, 1
        %v1072 = vpop.permute.xlu0 %1071
        %1073 = vrot.lane.b32.xlu0 %v1065, 1
        %v1074 = vpop.permute.xlu0 %1073
        %v1075 = vsel %vm441, %v1070, %v1072
        %v1076 = vsel %vm441, %v1072, %v1074
        %1079 = vst [vmem:[#allocation4 + $0x30] sm:$0xff] %v1075
        %1080 = vst [vmem:[#allocation4 + $0x38] sm:$0xff] %v1076
        %v1081 = vld [vmem:[#allocation2 + $0x8] sm:$0xff]
        %v1082 = vld [vmem:[#allocation2 + $0x10] sm:$0xff]
        %1083 = vst [vmem:[#allocation4 + $0x40] sm:$0xff] %v1081
        %1084 = vst [vmem:[#allocation4 + $0x48] sm:$0xff] %v1082
        %v1085 = vld [vmem:[#allocation2 + $0x8] sm:$0xff]
        %v1086 = vld [vmem:[#allocation2 + $0x10] sm:$0xff]
        %v1087 = vld [vmem:[#allocation2 + $0x18] sm:$0xff]
        %v1088 = vmul.f32 %v1085, %v456
        %v1089 = vmul.f32 %v1086, %v459
        %v1090 = vmul.f32 %v1087, %v458
        %1094 = vrot.lane.b32.xlu0 %v1088, 127
        %v1095 = vpop.permute.xlu0 %1094
        %1096 = vrot.lane.b32.xlu0 %v1089, 127
        %v1097 = vpop.permute.xlu0 %1096
        %1098 = vrot.lane.b32.xlu0 %v1090, 127
        %v1099 = vpop.permute.xlu0 %1098
        %v1100 = vsel %vm424, %v1095, %v1097
        %v1101 = vsel %vm424, %v1097, %v1099
        %1104 = vst [vmem:[#allocation4 + $0x50] sm:$0xff] %v1100
        %1105 = vst [vmem:[#allocation4 + $0x58] sm:$0xff] %v1101
        %v1106 = vld [vmem:[#allocation2 + $0x8] sm:$0xff]
        %v1107 = vld [vmem:[#allocation2 + $0x10] sm:$0xff]
        %v1108 = vld [vmem:[#allocation2 + $0x18] sm:$0xff]
        %v1109 = vmul.f32 %v1106, %v485
        %v1110 = vmul.f32 %v1107, %v488
        %v1111 = vmul.f32 %v1108, %v487
        %1115 = vrot.lane.b32.xlu0 %v1109, 113
        %v1116 = vpop.permute.xlu0 %1115
        %1117 = vrot.lane.b32.xlu0 %v1110, 113
        %v1118 = vpop.permute.xlu0 %1117
        %1119 = vrot.lane.b32.xlu0 %v1111, 113
        %v1120 = vpop.permute.xlu0 %1119
        %v1121 = vsel %vm393, %v1116, %v1118
        %v1122 = vsel %vm393, %v1118, %v1120
        %1125 = vst [vmem:[#allocation4 + $0x60] sm:$0xff] %v1121
        %1126 = vst [vmem:[#allocation4 + $0x68] sm:$0xff] %v1122
        %v1127 = vld [vmem:[#allocation2 + $0x8] sm:$0xff]
        %v1128 = vld [vmem:[#allocation2 + $0x10] sm:$0xff]
        %v1129 = vld [vmem:[#allocation2 + $0x18] sm:$0xff]
        %1133 = vrot.lane.b32.xlu0 %v1127, 112
        %v1134 = vpop.permute.xlu0 %1133
        %1135 = vrot.lane.b32.xlu0 %v1128, 112
        %v1136 = vpop.permute.xlu0 %1135
        %1137 = vrot.lane.b32.xlu0 %v1129, 112
        %v1138 = vpop.permute.xlu0 %1137
        %v1139 = vsel %vm522, %v1134, %v1136
        %v1140 = vsel %vm522, %v1136, %v1138
        %1143 = vst [vmem:[#allocation4 + $0x70] sm:$0xff] %v1139
        %1144 = vst [vmem:[#allocation4 + $0x78] sm:$0xff] %v1140
        %v1145 = vld [vmem:[#allocation2 + $0x8] sm:$0xff]
        %v1146 = vld [vmem:[#allocation2 + $0x10] sm:$0xff]
        %v1147 = vld [vmem:[#allocation2 + $0x18] sm:$0xff]
        %v1148 = vmul.f32 %v1145, %v533
        %v1149 = vmul.f32 %v1146, %v536
        %v1150 = vmul.f32 %v1147, %v535
        %1154 = vrot.lane.b32.xlu0 %v1148, 111
        %v1155 = vpop.permute.xlu0 %1154
        %1156 = vrot.lane.b32.xlu0 %v1149, 111
        %v1157 = vpop.permute.xlu0 %1156
        %1158 = vrot.lane.b32.xlu0 %v1150, 111
        %v1159 = vpop.permute.xlu0 %1158
        %v1160 = vsel %vm334, %v1155, %v1157
        %v1161 = vsel %vm334, %v1157, %v1159
        %1164 = vst [vmem:[#allocation4 + $0x80] sm:$0xff] %v1160
        %1165 = vst [vmem:[#allocation4 + $0x88] sm:$0xff] %v1161
        %v1166 = vld [vmem:[#allocation4] sm:$0xff]
        %v1167 = vld [vmem:[#allocation4 + $0x8] sm:$0xff]
        %v1168 = vld [vmem:[#allocation4 + $0x10] sm:$0xff]
        %v1169 = vld [vmem:[#allocation4 + $0x18] sm:$0xff]
        %v1170 = vld [vmem:[#allocation4 + $0x20] sm:$0xff]
        %v1171 = vld [vmem:[#allocation4 + $0x28] sm:$0xff]
        %v1172 = vld [vmem:[#allocation4 + $0x30] sm:$0xff]
        %v1173 = vld [vmem:[#allocation4 + $0x38] sm:$0xff]
        %v1174 = vld [vmem:[#allocation4 + $0x40] sm:$0xff]
        %v1175 = vld [vmem:[#allocation4 + $0x48] sm:$0xff]
        %v1176 = vld [vmem:[#allocation4 + $0x50] sm:$0xff]
        %v1177 = vld [vmem:[#allocation4 + $0x58] sm:$0xff]
        %v1178 = vld [vmem:[#allocation4 + $0x60] sm:$0xff]
        %v1179 = vld [vmem:[#allocation4 + $0x68] sm:$0xff]
        %v1180 = vld [vmem:[#allocation4 + $0x70] sm:$0xff]
        %v1181 = vld [vmem:[#allocation4 + $0x78] sm:$0xff]
        %v1182 = vld [vmem:[#allocation4 + $0x80] sm:$0xff]
        %v1183 = vld [vmem:[#allocation4 + $0x88] sm:$0xff]
        %1184 = vmatprep.subr.mxu0 0.0
        %1185 = vmatpush1.msra.mxu0 0.0
        %1186 = vmatprep.subr.mxu0 0.0
        %1187 = vmatpush1.msra.mxu0 0.0
        %1188 = vmatprep.subr.mxu0 0.0
        %1189 = vmatpush1.msra.mxu0 0.0
        %1190 = vmatprep.subr.mxu0 0.0
        %1191 = vmatpush1.msra.mxu0 0.0
        %1192 = vmatprep.subr.mxu0 0.0
        %1193 = vmatpush1.msra.mxu0 0.0
        %1194 = vmatprep.subr.mxu0 0.0
        %1195 = vmatpush1.msra.mxu0 0.0
        %1196 = vmatprep.subr.mxu0 0.0
        %1197 = vmatpush1.msra.mxu0 0.0
        %1198 = vmatprep.subr.mxu0 %v1183
        %1199 = vmatpush1.msra.mxu0 %v1182
        %1200 = vmatprep.subr.mxu0 %v1181
        %1201 = vmatpush1.msra.mxu0 %v1180
        %1202 = vmatprep.subr.mxu0 %v1179
        %1203 = vmatpush1.msra.mxu0 %v1178
        %1204 = vmatprep.subr.mxu0 %v1177
        %1205 = vmatpush1.msra.mxu0 %v1176
        %1206 = vmatprep.subr.mxu0 %v1175
        %1207 = vmatpush1.msra.mxu0 %v1174
        %1208 = vmatprep.subr.mxu0 %v1173
        %1209 = vmatpush1.msra.mxu0 %v1172
        %1210 = vmatprep.subr.mxu0 %v1171
        %1211 = vmatpush1.msra.mxu0 %v1170
        %1212 = vmatprep.subr.mxu0 %v1169
        %1213 = vmatpush1.msra.mxu0 %v1168
        %1214 = vmatprep.subr.mxu0 %v1167
        %1215 = vmatpush1.msra.mxu0 %v1166
        %1216 = vmatprep.subr.mxu0 0.0
        %1217 = vmatpush2.msra.mxu0 0.0
        %1218 = vmatprep.subr.mxu0 0.0
        %1219 = vmatpush2.msra.mxu0 0.0
        %1220 = vmatprep.subr.mxu0 0.0
        %1221 = vmatpush2.msra.mxu0 0.0
        %1222 = vmatprep.subr.mxu0 0.0
        %1223 = vmatpush2.msra.mxu0 0.0
        %1224 = vmatprep.subr.mxu0 0.0
        %1225 = vmatpush2.msra.mxu0 0.0
        %1226 = vmatprep.subr.mxu0 0.0
        %1227 = vmatpush2.msra.mxu0 0.0
        %1228 = vmatprep.subr.mxu0 0.0
        %1229 = vmatpush2.msra.mxu0 0.0
        %1230 = vmatprep.subr.mxu0 0.0
        %1231 = vmatpush2.msra.mxu0 0.0
        %1232 = vmatprep.subr.mxu0 0.0
        %1233 = vmatpush2.msra.mxu0 0.0
        %1234 = vmatprep.subr.mxu0 0.0
        %1235 = vmatpush2.msra.mxu0 0.0
        %1236 = vmatprep.subr.mxu0 0.0
        %1237 = vmatpush2.msra.mxu0 0.0
        %1238 = vmatprep.subr.mxu0 0.0
        %1239 = vmatpush2.msra.mxu0 0.0
        %1240 = vmatprep.subr.mxu0 0.0
        %1241 = vmatpush2.msra.mxu0 0.0
        %1242 = vmatprep.subr.mxu0 0.0
        %1243 = vmatpush2.msra.mxu0 0.0
        %1244 = vmatprep.subr.mxu0 0.0
        %1245 = vmatpush2.msra.mxu0 0.0
        %1246 = vmatprep.subr.mxu0 0.0
        %1247 = vmatpush2.msra.mxu0 0.0
        %1248 = vmatprep.mubr.f32.mxu0 0.0
        %1249 = vmatmul.mubr.f32.gmra.mxu0 %v583
        %v1250 = vpop.f32.mrf.mxu0
        %v1251 = vadd.f32 %v579, %v1250
        %v1252 = vpop.f32.mrf.mxu0
        %v1253 = vadd.f32 %v579, %v1252
        %1254 = vdwg.mxu0
        %v1255 = vmax.f32 %v1251, 0.0
        %v1256 = vmax.f32 %v1253, 0.0
        %1257 = vst [vmem:[#allocation3 + $0x8] sm:$0xff] %v1255
        %1258 = vst [vmem:[#allocation3 + $0x10] sm:$0xff] %v1256
        %v1259 = vld [vmem:[#allocation3] sm:$0xff]
        %v1260 = vld [vmem:[#allocation3 + $0x8] sm:$0xff]
        %v1261 = vld [vmem:[#allocation3 + $0x10] sm:$0xff]
        %v1262 = vmul.f32 %v1259, %v673
        %v1263 = vmul.f32 %v1260, %v676
        %v1264 = vmul.f32 %v1261, %v675
        %1268 = vrot.lane.b32.xlu0 %v1262, 17
        %v1269 = vpop.permute.xlu0 %1268
        %1270 = vrot.lane.b32.xlu0 %v1263, 17
        %v1271 = vpop.permute.xlu0 %1270
        %1272 = vrot.lane.b32.xlu0 %v1264, 17
        %v1273 = vpop.permute.xlu0 %1272
        %v1274 = vsel %vm351, %v1269, %v1271
        %v1275 = vsel %vm351, %v1271, %v1273
        %1278 = vst [vmem:[#allocation5] sm:$0xff] %v1274
        %1279 = vst [vmem:[#allocation5 + $0x8] sm:$0xff] %v1275
        %v1280 = vld [vmem:[#allocation3] sm:$0xff]
        %v1281 = vld [vmem:[#allocation3 + $0x8] sm:$0xff]
        %v1282 = vld [vmem:[#allocation3 + $0x10] sm:$0xff]
        %1286 = vrot.lane.b32.xlu0 %v1280, 16
        %v1287 = vpop.permute.xlu0 %1286
        %1288 = vrot.lane.b32.xlu0 %v1281, 16
        %v1289 = vpop.permute.xlu0 %1288
        %1290 = vrot.lane.b32.xlu0 %v1282, 16
        %v1291 = vpop.permute.xlu0 %1290
        %v1292 = vsel %vm370, %v1287, %v1289
        %v1293 = vsel %vm370, %v1289, %v1291
        %1296 = vst [vmem:[#allocation5 + $0x10] sm:$0xff] %v1292
        %1297 = vst [vmem:[#allocation5 + $0x18] sm:$0xff] %v1293
        %v1298 = vld [vmem:[#allocation3] sm:$0xff]
        %v1299 = vld [vmem:[#allocation3 + $0x8] sm:$0xff]
        %v1300 = vld [vmem:[#allocation3 + $0x10] sm:$0xff]
        %v1301 = vmul.f32 %v1298, %v729
        %v1302 = vmul.f32 %v1299, %v732
        %v1303 = vmul.f32 %v1300, %v731
        %1307 = vrot.lane.b32.xlu0 %v1301, 15
        %v1308 = vpop.permute.xlu0 %1307
        %1309 = vrot.lane.b32.xlu0 %v1302, 15
        %v1310 = vpop.permute.xlu0 %1309
        %1311 = vrot.lane.b32.xlu0 %v1303, 15
        %v1312 = vpop.permute.xlu0 %1311
        %v1313 = vsel %vm410, %v1308, %v1310
        %v1314 = vsel %vm410, %v1310, %v1312
        %1317 = vst [vmem:[#allocation5 + $0x20] sm:$0xff] %v1313
        %1318 = vst [vmem:[#allocation5 + $0x28] sm:$0xff] %v1314
        %v1319 = vld [vmem:[#allocation3] sm:$0xff]
        %v1320 = vld [vmem:[#allocation3 + $0x8] sm:$0xff]
        %v1321 = vld [vmem:[#allocation3 + $0x10] sm:$0xff]
        %v1322 = vmul.f32 %v1319, %v758
        %v1323 = vmul.f32 %v1320, %v761
        %v1324 = vmul.f32 %v1321, %v760
        %1328 = vrot.lane.b32.xlu0 %v1322, 1
        %v1329 = vpop.permute.xlu0 %1328
        %1330 = vrot.lane.b32.xlu0 %v1323, 1
        %v1331 = vpop.permute.xlu0 %1330
        %1332 = vrot.lane.b32.xlu0 %v1324, 1
        %v1333 = vpop.permute.xlu0 %1332
        %v1334 = vsel %vm441, %v1329, %v1331
        %v1335 = vsel %vm441, %v1331, %v1333
        %1338 = vst [vmem:[#allocation5 + $0x30] sm:$0xff] %v1334
        %1339 = vst [vmem:[#allocation5 + $0x38] sm:$0xff] %v1335
        %v1340 = vld [vmem:[#allocation3 + $0x8] sm:$0xff]
        %v1341 = vld [vmem:[#allocation3 + $0x10] sm:$0xff]
        %1342 = vst [vmem:[#allocation5 + $0x40] sm:$0xff] %v1340
        %1343 = vst [vmem:[#allocation5 + $0x48] sm:$0xff] %v1341
        %v1344 = vld [vmem:[#allocation3 + $0x8] sm:$0xff]
        %v1345 = vld [vmem:[#allocation3 + $0x10] sm:$0xff]
        %v1346 = vld [vmem:[#allocation3 + $0x18] sm:$0xff]
        %v1347 = vmul.f32 %v1344, %v791
        %v1348 = vmul.f32 %v1345, %v794
        %v1349 = vmul.f32 %v1346, %v793
        %1353 = vrot.lane.b32.xlu0 %v1347, 127
        %v1354 = vpop.permute.xlu0 %1353
        %1355 = vrot.lane.b32.xlu0 %v1348, 127
        %v1356 = vpop.permute.xlu0 %1355
        %1357 = vrot.lane.b32.xlu0 %v1349, 127
        %v1358 = vpop.permute.xlu0 %1357
        %v1359 = vsel %vm424, %v1354, %v1356
        %v1360 = vsel %vm424, %v1356, %v1358
        %1363 = vst [vmem:[#allocation5 + $0x50] sm:$0xff] %v1359
        %1364 = vst [vmem:[#allocation5 + $0x58] sm:$0xff] %v1360
        %v1365 = vld [vmem:[#allocation3 + $0x8] sm:$0xff]
        %v1366 = vld [vmem:[#allocation3 + $0x10] sm:$0xff]
        %v1367 = vld [vmem:[#allocation3 + $0x18] sm:$0xff]
        %v1368 = vmul.f32 %v1365, %v820
        %v1369 = vmul.f32 %v1366, %v823
        %v1370 = vmul.f32 %v1367, %v822
        %1374 = vrot.lane.b32.xlu0 %v1368, 113
        %v1375 = vpop.permute.xlu0 %1374
        %1376 = vrot.lane.b32.xlu0 %v1369, 113
        %v1377 = vpop.permute.xlu0 %1376
        %1378 = vrot.lane.b32.xlu0 %v1370, 113
        %v1379 = vpop.permute.xlu0 %1378
        %v1380 = vsel %vm393, %v1375, %v1377
        %v1381 = vsel %vm393, %v1377, %v1379
        %1384 = vst [vmem:[#allocation5 + $0x60] sm:$0xff] %v1380
        %1385 = vst [vmem:[#allocation5 + $0x68] sm:$0xff] %v1381
        %v1386 = vld [vmem:[#allocation3 + $0x8] sm:$0xff]
        %v1387 = vld [vmem:[#allocation3 + $0x10] sm:$0xff]
        %v1388 = vld [vmem:[#allocation3 + $0x18] sm:$0xff]
        %1392 = vrot.lane.b32.xlu0 %v1386, 112
        %v1393 = vpop.permute.xlu0 %1392
        %1394 = vrot.lane.b32.xlu0 %v1387, 112
        %v1395 = vpop.permute.xlu0 %1394
        %1396 = vrot.lane.b32.xlu0 %v1388, 112
        %v1397 = vpop.permute.xlu0 %1396
        %v1398 = vsel %vm522, %v1393, %v1395
        %v1399 = vsel %vm522, %v1395, %v1397
        %1402 = vst [vmem:[#allocation5 + $0x70] sm:$0xff] %v1398
        %1403 = vst [vmem:[#allocation5 + $0x78] sm:$0xff] %v1399
        %v1404 = vld [vmem:[#allocation3 + $0x8] sm:$0xff]
        %v1405 = vld [vmem:[#allocation3 + $0x10] sm:$0xff]
        %v1406 = vld [vmem:[#allocation3 + $0x18] sm:$0xff]
        %v1407 = vmul.f32 %v1404, %v867
        %v1408 = vmul.f32 %v1405, %v870
        %v1409 = vmul.f32 %v1406, %v869
        %1413 = vrot.lane.b32.xlu0 %v1407, 111
        %v1414 = vpop.permute.xlu0 %1413
        %1415 = vrot.lane.b32.xlu0 %v1408, 111
        %v1416 = vpop.permute.xlu0 %1415
        %1417 = vrot.lane.b32.xlu0 %v1409, 111
        %v1418 = vpop.permute.xlu0 %1417
        %v1419 = vsel %vm334, %v1414, %v1416
        %v1420 = vsel %vm334, %v1416, %v1418
        %1423 = vst [vmem:[#allocation5 + $0x80] sm:$0xff] %v1419
        %1424 = vst [vmem:[#allocation5 + $0x88] sm:$0xff] %v1420
        %v1425 = vld [vmem:[#allocation5] sm:$0xff]
        %v1426 = vld [vmem:[#allocation5 + $0x8] sm:$0xff]
        %v1427 = vld [vmem:[#allocation5 + $0x10] sm:$0xff]
        %v1428 = vld [vmem:[#allocation5 + $0x18] sm:$0xff]
        %v1429 = vld [vmem:[#allocation5 + $0x20] sm:$0xff]
        %v1430 = vld [vmem:[#allocation5 + $0x28] sm:$0xff]
        %v1431 = vld [vmem:[#allocation5 + $0x30] sm:$0xff]
        %v1432 = vld [vmem:[#allocation5 + $0x38] sm:$0xff]
        %v1433 = vld [vmem:[#allocation5 + $0x40] sm:$0xff]
        %v1434 = vld [vmem:[#allocation5 + $0x48] sm:$0xff]
        %v1435 = vld [vmem:[#allocation5 + $0x50] sm:$0xff]
        %v1436 = vld [vmem:[#allocation5 + $0x58] sm:$0xff]
        %v1437 = vld [vmem:[#allocation5 + $0x60] sm:$0xff]
        %v1438 = vld [vmem:[#allocation5 + $0x68] sm:$0xff]
        %v1439 = vld [vmem:[#allocation5 + $0x70] sm:$0xff]
        %v1440 = vld [vmem:[#allocation5 + $0x78] sm:$0xff]
        %v1441 = vld [vmem:[#allocation5 + $0x80] sm:$0xff]
        %v1442 = vld [vmem:[#allocation5 + $0x88] sm:$0xff]
        %1443 = vmatprep.subr.mxu0 0.0
        %1444 = vmatpush1.msra.mxu0 0.0
        %1445 = vmatprep.subr.mxu0 0.0
        %1446 = vmatpush1.msra.mxu0 0.0
        %1447 = vmatprep.subr.mxu0 0.0
        %1448 = vmatpush1.msra.mxu0 0.0
        %1449 = vmatprep.subr.mxu0 0.0
        %1450 = vmatpush1.msra.mxu0 0.0
        %1451 = vmatprep.subr.mxu0 0.0
        %1452 = vmatpush1.msra.mxu0 0.0
        %1453 = vmatprep.subr.mxu0 0.0
        %1454 = vmatpush1.msra.mxu0 0.0
        %1455 = vmatprep.subr.mxu0 0.0
        %1456 = vmatpush1.msra.mxu0 0.0
        %1457 = vmatprep.subr.mxu0 %v1442
        %1458 = vmatpush1.msra.mxu0 %v1441
        %1459 = vmatprep.subr.mxu0 %v1440
        %1460 = vmatpush1.msra.mxu0 %v1439
        %1461 = vmatprep.subr.mxu0 %v1438
        %1462 = vmatpush1.msra.mxu0 %v1437
        %1463 = vmatprep.subr.mxu0 %v1436
        %1464 = vmatpush1.msra.mxu0 %v1435
        %1465 = vmatprep.subr.mxu0 %v1434
        %1466 = vmatpush1.msra.mxu0 %v1433
        %1467 = vmatprep.subr.mxu0 %v1432
        %1468 = vmatpush1.msra.mxu0 %v1431
        %1469 = vmatprep.subr.mxu0 %v1430
        %1470 = vmatpush1.msra.mxu0 %v1429
        %1471 = vmatprep.subr.mxu0 %v1428
        %1472 = vmatpush1.msra.mxu0 %v1427
        %1473 = vmatprep.subr.mxu0 %v1426
        %1474 = vmatpush1.msra.mxu0 %v1425
        %1475 = vmatprep.subr.mxu0 0.0
        %1476 = vmatpush2.msra.mxu0 0.0
        %1477 = vmatprep.subr.mxu0 0.0
        %1478 = vmatpush2.msra.mxu0 0.0
        %1479 = vmatprep.subr.mxu0 0.0
        %1480 = vmatpush2.msra.mxu0 0.0
        %1481 = vmatprep.subr.mxu0 0.0
        %1482 = vmatpush2.msra.mxu0 0.0
        %1483 = vmatprep.subr.mxu0 0.0
        %1484 = vmatpush2.msra.mxu0 0.0
        %1485 = vmatprep.subr.mxu0 0.0
        %1486 = vmatpush2.msra.mxu0 0.0
        %1487 = vmatprep.subr.mxu0 0.0
        %1488 = vmatpush2.msra.mxu0 0.0
        %1489 = vmatprep.subr.mxu0 0.0
        %1490 = vmatpush2.msra.mxu0 0.0
        %1491 = vmatprep.subr.mxu0 0.0
        %1492 = vmatpush2.msra.mxu0 0.0
        %1493 = vmatprep.subr.mxu0 0.0
        %1494 = vmatpush2.msra.mxu0 0.0
        %1495 = vmatprep.subr.mxu0 0.0
        %1496 = vmatpush2.msra.mxu0 0.0
        %1497 = vmatprep.subr.mxu0 0.0
        %1498 = vmatpush2.msra.mxu0 0.0
        %1499 = vmatprep.subr.mxu0 0.0
        %1500 = vmatpush2.msra.mxu0 0.0
        %1501 = vmatprep.subr.mxu0 0.0
        %1502 = vmatpush2.msra.mxu0 0.0
        %1503 = vmatprep.subr.mxu0 0.0
        %1504 = vmatpush2.msra.mxu0 0.0
        %1505 = vmatprep.subr.mxu0 0.0
        %1506 = vmatpush2.msra.mxu0 0.0
        %1507 = vmatprep.mubr.f32.mxu0 0.0
        %1508 = vmatmul.mubr.f32.gmra.mxu0 %v916
        %v1509 = vpop.f32.mrf.mxu0
        %v1510 = vadd.f32 %v913, %v1509
        %v1511 = vpop.f32.mrf.mxu0
        %v1512 = vadd.f32 %v913, %v1511
        %1513 = vdwg.mxu0
        %v1514 = vadd.f32 %v1510, %v996
        %v1515 = vadd.f32 %v1512, %v997
        %v1516 = vmax.f32 %v1514, 0.0
        %v1517 = vmax.f32 %v1515, 0.0
        %s1518 = scalar_lea.vmem %s297, 16 [#allocation9]
        %1519 = vst [vmem:[%s1518] sm:$0xff] %v1516
        %1520 = vst [vmem:[%s1518 + $0x8] sm:$0xff] %v1517
        %s1521 = sand.u32 %s184, 1
        %s1522 = scalar_lea.sflag [#allocation8], %s1521
        %s1523 = sand.u32 %s184, 1
        %s1524 = smul.addr %s1523, 32
        %s1525 = scalar_lea.vmem [#allocation9], %s1524
        // Predicated region
        $region53: #{tpu_custom_call.1} parent=47 // pred_check
          %p1526 = pneg %p194
        $region54: #{tpu_custom_call.1} parent=47 // pred_check_branch
          %1528 = sbr.rel (%p1526) target = $region56
        $region55: #{tpu_custom_call.1} parent=47 // pred_region
          %s1529 = smul.u32 2, %s24
          %s1531 = ssub.s32 512, 512
          %1532 = vsyncadd %s1522, %s1531
          %s1533 = smul.addr %s1529, 2
          %s1534 = smul.addr %s1533, 128
          %s1535 = scalar_lea.hbm %s7, %s1534
          %s1536 = sshll.u32 %s1525, 4
          %s1537 = int_to_ptr.vmem [resolvable:$true] %s1536
          %1542 = dma.vmem_to_hbm [thread:$0]  %s1537, 512, %s1535, %s1522, 256, 256, 16
        $region56: #{tpu_custom_call.1} parent=47 // pred_fallthru
          _
      $region48: #{tpu_custom_call.1} parent=5 // pred_fallthru
        _
      %p1543 = scmp.le.s32.totalorder 2, %s19
      // Predicated region
      $region57: #{tpu_custom_call.1} parent=5 // pred_check
        %p1544 = pneg %p1543
      $region58: #{tpu_custom_call.1} parent=5 // pred_check_branch
        %1546 = sbr.rel (%p1544) target = $region60
      $region59: #{tpu_custom_call.1} parent=5 // pred_region
        %s1547 = ssub.s32 %s19, 2
        // Predicated region
        $region61: #{tpu_custom_call.1} parent=59 // pred_check
          %p1548 = pneg %p200
        $region62: #{tpu_custom_call.1} parent=59 // pred_check_branch
          %1550 = sbr.rel (%p1548) target = $region64
        $region63: #{tpu_custom_call.1} parent=59 // pred_region
          %s1551 = sand.u32 %s185, 1
          %s1552 = scalar_lea.sflag [#allocation8], %s1551
          %s1553 = sand.u32 %s185, 1
          %s1554 = smul.addr %s1553, 32
          %s1555 = scalar_lea.vmem [#allocation9], %s1554
          %1556 = dma.done %s1552, 512
        $region64: #{tpu_custom_call.1} parent=59 // pred_fallthru
          _
      $region60: #{tpu_custom_call.1} parent=5 // pred_fallthru
        _
    $region6: #{tpu_custom_call.1} parent=1 // loop_footer
      %s23 = sadd.s32 1, %s19
    $region7: #{tpu_custom_call.1} parent=1 // loop_footer_branch
      %18 = sbr.rel target = $region3
    $region8: #{tpu_custom_call.1} parent=1 // loop_exit
      _
    %1557 = vsyncpa [#allocation7], 1
    %s1558 = scalar_lea.sflag [#allocation7], 1
    %1559 = vsyncpa %s1558, 1
    %1560 = vsyncpa [#allocation8], 1
    %s1561 = scalar_lea.sflag [#allocation8], 1
    %1562 = vsyncpa %s1561, 1

</llo_original>
